<compile_context>
chip_gen: v7x
topology: tpu7x:2x2x1
jax: 0.10.0
libtpu: 0.0.40
codegen_flags: <defaults>
</compile_context>

<pallas_src>
import math
from functools import partial

import jax
import jax.numpy as jnp
from jax.experimental import pallas as pl
from jax.experimental.pallas import tpu as pltpu


# ----------------------------------------------------------------------------
# Fused layer kernel: one (batch, L-tile) per grid step, all heads at once.
# ----------------------------------------------------------------------------
def _fused_attention_layer_kernel(
    xq_ref, xk_ref, xv_ref,
    wq_ref, bq_ref, wk_ref, bk_ref, wv_ref, bv_ref, wo_ref, bo_ref,
    o_ref, *attn_refs,
    n_heads, d_keys, d_values, scale, exp_dtype):
    H, dk, dv = n_heads, d_keys, d_values

    # Cast activations to bf16 in-kernel (inputs arrive at caller dtype).
    xq = xq_ref[0].astype(jnp.bfloat16)          # (tL, d_model)
    xk = xk_ref[0].astype(jnp.bfloat16)          # (S,  d_model)
    xv = xv_ref[0].astype(jnp.bfloat16)          # (S,  d_model)
    tL = xq.shape[0]
    S = xk.shape[0]

    # --- Q / K / V projections: bf16 operands, f32 accumulation, f32 bias ---
    q = jnp.dot(xq, wq_ref[...], preferred_element_type=jnp.float32) + bq_ref[...]
    k = jnp.dot(xk, wk_ref[...], preferred_element_type=jnp.float32) + bk_ref[...]
    v = jnp.dot(xv, wv_ref[...], preferred_element_type=jnp.float32) + bv_ref[...]

    # Fold 1/sqrt(dk) into Q (tL*H*dk multiplies instead of H*tL*S on scores).
    qh = (q * scale).reshape(tL, H, dk).astype(jnp.bfloat16)
    kh = k.reshape(S, H, dk).astype(jnp.bfloat16)
    vh = v.reshape(S, H, dv).astype(jnp.bfloat16)

    # --- all-head attention, batched over heads (no per-head grid steps) ---
    scores = jnp.einsum("lhe,she->hls", qh, kh,
                        preferred_element_type=jnp.float32)           # (H, tL, S)
    m = jnp.max(scores, axis=-1, keepdims=True)                       # f32
    p = jnp.exp((scores - m).astype(exp_dtype))                       # bf16 (v6e/v7x) / f32 (v5e)
    denom = jnp.sum(p, axis=-1, keepdims=True, dtype=jnp.float32)     # f32 accumulation
    inv = pl.reciprocal(denom, approx=True)                           # EUP path, free slot
    attn = (p * inv).astype(jnp.bfloat16)                             # (H, tL, S) bf16

    ctx = jnp.einsum("hls,shd->lhd", attn, vh,
                     preferred_element_type=jnp.float32)              # (tL, H, dv)
    ctx = ctx.reshape(tL, H * dv).astype(jnp.bfloat16)

    # --- output projection ---
    out = jnp.dot(ctx, wo_ref[...], preferred_element_type=jnp.float32) + bo_ref[...]
    o_ref[0] = out.astype(o_ref.dtype)

    if attn_refs:                    # static: only present when output_attention
        attn_refs[0][0] = attn.astype(attn_refs[0].dtype)


# ----------------------------------------------------------------------------
# Parameter init (matches torch nn.Linear default init) + one-time packing.
# ----------------------------------------------------------------------------
def init_attention_layer_params(key, d_model, n_heads, d_keys=None, d_values=None):
    d_keys = d_keys or d_model // n_heads
    d_values = d_values or d_model // n_heads
    ks = jax.random.split(key, 8)

    def lin_init(kw, kb, fan_in, fan_out):
        bound = 1.0 / math.sqrt(fan_in)
        w = jax.random.uniform(kw, (fan_in, fan_out), jnp.float32, -bound, bound)
        b = jax.random.uniform(kb, (fan_out,), jnp.float32, -bound, bound)
        return w, b

    return {
        "q_proj": lin_init(ks[0], ks[1], d_model, d_keys * n_heads),
        "k_proj": lin_init(ks[2], ks[3], d_model, d_keys * n_heads),
        "v_proj": lin_init(ks[4], ks[5], d_model, d_values * n_heads),
        "out_proj": lin_init(ks[6], ks[7], d_values * n_heads, d_model),
        "n_heads": n_heads,
        "d_keys": d_keys,
        "d_values": d_values,
        "d_model": d_model,
    }


def pack_attention_layer_params(params):
    """Cast weights to bf16 ONCE (not per forward call); keep biases in f32."""
    wq, bq = params["q_proj"]
    wk, bk = params["k_proj"]
    wv, bv = params["v_proj"]
    wo, bo = params["out_proj"]
    cdt = jnp.bfloat16
    return {
        "wq": wq.astype(cdt), "bq": bq.reshape(1, -1).astype(jnp.float32),
        "wk": wk.astype(cdt), "bk": bk.reshape(1, -1).astype(jnp.float32),
        "wv": wv.astype(cdt), "bv": bv.reshape(1, -1).astype(jnp.float32),
        "wo": wo.astype(cdt), "bo": bo.reshape(1, -1).astype(jnp.float32),
        "n_heads": params["n_heads"],
        "d_keys": params["d_keys"],
        "d_values": params["d_values"],
        "d_model": params["d_model"],
    }


# ----------------------------------------------------------------------------
# Helpers
# ----------------------------------------------------------------------------
def _pick_block_l(L, requested=None):
    """Pick an L-tile size that divides L and respects the (8,128) constraint."""
    if requested is not None and L % requested == 0 and (requested % 8 == 0 or requested == L):
        return requested
    for t in (256, 128, 64, 32, 16, 8):
        if L % t == 0:
            return t
    return L


def _vmem_limit_bytes(tL, S, d_model, H, dk, dv, in_bytes, out_bytes, output_attention):
    """Per-step VMEM footprint estimate (blocks + compiler scratch) with margin."""
    bf16, f32 = 2, 4
    weights = (2 * d_model * H * dk + d_model * H * dv + H * dv * d_model) * bf16
    biases = (2 * H * dk + H * dv + d_model) * f32
    acts = 2 * (tL * d_model + 2 * S * d_model) * in_bytes            # double-buffered
    outs = 2 * tL * d_model * out_bytes
    attn_out = 2 * H * tL * S * bf16 if output_attention else 0
    scratch = ((tL * H * dk + S * H * dk + S * H * dv) * (f32 + bf16)  # q/k/v f32 + bf16
               + H * tL * S * (f32 + bf16 + bf16)                      # scores, p, attn
               + tL * H * dv * (f32 + bf16)                            # ctx
               + tL * d_model * f32)                                   # out acc
    total = 2 * weights + biases + acts + outs + attn_out + scratch
    return int(min(max(int(total * 1.5) + (2 << 20), 32 << 20), 64 << 20))


# ----------------------------------------------------------------------------
# AttentionLayer_v forward: single fused pallas_call, grid over (B, L-tiles).
# ----------------------------------------------------------------------------
def attention_layer_v_forward(packed, queries, keys, values, attn_mask=None,
                              tau=None, delta=None, output_attention=True,
                              block_l=None, exp_dtype=jnp.bfloat16,
                              attn_dtype=jnp.bfloat16):
    del attn_mask, tau, delta  # TODO(synk): masking not implemented (mask_flag=False)
    B, L, d_model = queries.shape
    _, S, _ = keys.shape
    H = packed["n_heads"]
    dk = packed["d_keys"]
    dv = packed["d_values"]

    tL = _pick_block_l(L, block_l)
    n_lt = L // tL

    wq, bq = packed["wq"], packed["bq"]
    wk, bk = packed["wk"], packed["bk"]
    wv, bv = packed["wv"], packed["bv"]
    wo, bo = packed["wo"], packed["bo"]

    kernel = partial(_fused_attention_layer_kernel,
                     n_heads=H, d_keys=dk, d_values=dv,
                     scale=1.0 / math.sqrt(dk), exp_dtype=exp_dtype)

    q_map = lambda b, lt: (b, lt, 0)        # per (batch, L-tile) query/output blocks
    kv_map = lambda b, lt: (b, 0, 0)        # K/V constant over the L-tile axis
    const2 = lambda b, lt: (0, 0)           # weights/biases stay VMEM-resident

    in_specs = [
        pl.BlockSpec((1, tL, d_model), q_map),
        pl.BlockSpec((1, S, d_model), kv_map),
        pl.BlockSpec((1, S, d_model), kv_map),
        pl.BlockSpec((d_model, H * dk), const2),
        pl.BlockSpec((1, H * dk), const2),
        pl.BlockSpec((d_model, H * dk), const2),
        pl.BlockSpec((1, H * dk), const2),
        pl.BlockSpec((d_model, H * dv), const2),
        pl.BlockSpec((1, H * dv), const2),
        pl.BlockSpec((H * dv, d_model), const2),
        pl.BlockSpec((1, d_model), const2),
    ]
    o_shape = jax.ShapeDtypeStruct((B, L, d_model), queries.dtype)
    o_spec = pl.BlockSpec((1, tL, d_model), q_map)

    # Advisory cost estimate so XLA schedules around the fused custom call.
    flops = 2 * B * (L * d_model * H * dk          # Q proj
                     + S * d_model * H * dk        # K proj
                     + S * d_model * H * dv        # V proj
                     + H * L * S * dk              # Q K^T
                     + H * L * S * dv              # A V
                     + L * H * dv * d_model)       # out proj
    transcendentals = B * H * L * S
    in_bytes = jnp.dtype(queries.dtype).itemsize
    attn_bytes = jnp.dtype(attn_dtype).itemsize
    bytes_accessed = int(
        (queries.size + keys.size + values.size) * in_bytes
        + (wq.size + wk.size + wv.size + wo.size) * 2
        + (bq.size + bk.size + bv.size + bo.size) * 4
        + B * L * d_model * in_bytes
        + (B * H * L * S * attn_bytes if output_attention else 0))
    cost = pl.CostEstimate(flops=int(flops), transcendentals=int(transcendentals),
                           bytes_accessed=bytes_accessed)

    vmem_limit = _vmem_limit_bytes(tL, S, d_model, H, dk, dv,
                                   in_bytes, in_bytes, output_attention)
    cparams = pltpu.CompilerParams(
        dimension_semantics=("parallel", "parallel"),
        vmem_limit_bytes=vmem_limit)

    args = (queries, keys, values, wq, bq, wk, bk, wv, bv, wo, bo)
    grid = (B, n_lt)

    if output_attention:
        out, attn = pl.pallas_call(
            kernel,
            out_shape=(o_shape, jax.ShapeDtypeStruct((B, H, L, S), attn_dtype)),
            grid=grid,
            in_specs=in_specs,
            out_specs=(o_spec,
                       pl.BlockSpec((1, H, tL, S), lambda b, lt: (b, 0, lt, 0))),
            compiler_params=cparams,
            cost_estimate=cost,
        )(*args)
        return out, attn

    out = pl.pallas_call(
        kernel,
        out_shape=o_shape,
        grid=grid,
        in_specs=in_specs,
        out_specs=o_spec,
        compiler_params=cparams,
        cost_estimate=cost,
    )(*args)
    return out, None


# ----------------------------------------------------------------------------
# Pure-JAX reference (f32) for a sanity check.
# ----------------------------------------------------------------------------
def _reference_forward(params, queries, keys, values):
    B, L, d_model = queries.shape
    _, S, _ = keys.shape
    H, dk, dv = params["n_heads"], params["d_keys"], params["d_values"]
    wq, bq = params["q_proj"]
    wk, bk = params["k_proj"]
    wv, bv = params["v_proj"]
    wo, bo = params["out_proj"]
    q = (queries @ wq + bq).reshape(B, L, H, dk)
    k = (keys @ wk + bk).reshape(B, S, H, dk)
    v = (values @ wv + bv).reshape(B, S, H, dv)
    scores = jnp.einsum("blhe,bshe->bhls", q, k) / math.sqrt(dk)
    attn = jax.nn.softmax(scores, axis=-1)
    ctx = jnp.einsum("bhls,bshd->blhd", attn, v).reshape(B, L, H * dv)
    return ctx @ wo + bo, attn


if __name__ == "__main__":
    B, L, S = 2, 16, 8
    d_model, n_heads = 32, 4

    key = jax.random.PRNGKey(0)
    kp, kq, kk, kv = jax.random.split(key, 4)

    params = init_attention_layer_params(kp, d_model, n_heads)
    packed = pack_attention_layer_params(params)     # one-time bf16 weight cast

    queries = jax.random.normal(kq, (B, L, d_model), jnp.float32)
    keys = jax.random.normal(kk, (B, S, d_model), jnp.float32)
    values = jax.random.normal(kv, (B, S, d_model), jnp.float32)

    # block_l=8 exercises the (B, L-tiles) = (2, 2) grid path.
    out, attn = attention_layer_v_forward(packed, queries, keys, values,
                                          attn_mask=None, output_attention=True,
                                          block_l=8)
    out = jax.block_until_ready(out)
    attn = jax.block_until_ready(attn)

    assert out.shape == (B, L, d_model)
    assert attn.shape == (B, n_heads, L, S)

    # Loose tolerance: bf16 MXU operands / bf16 exp, f32 accumulation.
    ref_out, ref_attn = _reference_forward(params, queries, keys, values)
    assert jnp.allclose(out, ref_out, atol=6e-2, rtol=6e-2), \
        float(jnp.max(jnp.abs(out - ref_out)))
    attn_f32 = attn.astype(jnp.float32)
    assert jnp.allclose(attn_f32, ref_attn, atol=3e-2, rtol=3e-2), \
        float(jnp.max(jnp.abs(attn_f32 - ref_attn)))

    # Fast path: no attention-map output.
    out2, attn2 = attention_layer_v_forward(packed, queries, keys, values,
                                            attn_mask=None, output_attention=False,
                                            block_l=8)
    out2 = jax.block_until_ready(out2)
    assert attn2 is None
    assert jnp.allclose(out2, ref_out, atol=6e-2, rtol=6e-2)

    print("KERNEL_OK")
</pallas_src>

<mosaic_0001>
module attributes {stable_mosaic.version = 11 : i64} {
  func.func @_fused_attention_layer_kernel(%arg0: i32, %arg1: i32, %arg2: memref<1x8x32xf32, #tpu.memory_space<vmem>>, %arg3: memref<1x8x32xf32, #tpu.memory_space<vmem>>, %arg4: memref<1x8x32xf32, #tpu.memory_space<vmem>>, %arg5: memref<32x32xbf16, #tpu.memory_space<vmem>>, %arg6: memref<1x32xf32, #tpu.memory_space<vmem>>, %arg7: memref<32x32xbf16, #tpu.memory_space<vmem>>, %arg8: memref<1x32xf32, #tpu.memory_space<vmem>>, %arg9: memref<32x32xbf16, #tpu.memory_space<vmem>>, %arg10: memref<1x32xf32, #tpu.memory_space<vmem>>, %arg11: memref<32x32xbf16, #tpu.memory_space<vmem>>, %arg12: memref<1x32xf32, #tpu.memory_space<vmem>>, %arg13: memref<1x8x32xf32, #tpu.memory_space<vmem>>, %arg14: memref<1x4x8x8xbf16, #tpu.memory_space<vmem>>) attributes {dimension_semantics = [#tpu.dimension_semantics<parallel>, #tpu.dimension_semantics<parallel>], iteration_bounds = array<i64: 2, 2>, scalar_prefetch = 0 : i64, scratch_operands = 0 : i64, tpu.core_type = #tpu.core_type<tc>, window_params = [{transform_indices = @transform_0, window_bounds = array<i64: 1, 8, 32>}, {transform_indices = @transform_1, window_bounds = array<i64: 1, 8, 32>}, {transform_indices = @transform_2, window_bounds = array<i64: 1, 8, 32>}, {pipeline_mode = #tpu.pipeline_mode<synchronous>, transform_indices = @transform_3, window_bounds = array<i64: 32, 32>}, {pipeline_mode = #tpu.pipeline_mode<synchronous>, transform_indices = @transform_4, window_bounds = array<i64: 1, 32>}, {pipeline_mode = #tpu.pipeline_mode<synchronous>, transform_indices = @transform_5, window_bounds = array<i64: 32, 32>}, {pipeline_mode = #tpu.pipeline_mode<synchronous>, transform_indices = @transform_6, window_bounds = array<i64: 1, 32>}, {pipeline_mode = #tpu.pipeline_mode<synchronous>, transform_indices = @transform_7, window_bounds = array<i64: 32, 32>}, {pipeline_mode = #tpu.pipeline_mode<synchronous>, transform_indices = @transform_8, window_bounds = array<i64: 1, 32>}, {pipeline_mode = #tpu.pipeline_mode<synchronous>, transform_indices = @transform_9, window_bounds = array<i64: 32, 32>}, {pipeline_mode = #tpu.pipeline_mode<synchronous>, transform_indices = @transform_10, window_bounds = array<i64: 1, 32>}, {transform_indices = @transform_11, window_bounds = array<i64: 1, 8, 32>}, {transform_indices = @transform_12, window_bounds = array<i64: 1, 4, 8, 8>}]} {
    %c0 = arith.constant 0 : index
    %c0_0 = arith.constant 0 : index
    %c0_1 = arith.constant 0 : index
    %0 = vector.load %arg2[%c0, %c0_0, %c0_1] : memref<1x8x32xf32, #tpu.memory_space<vmem>>, vector<1x8x32xf32>
    %1 = vector.shape_cast %0 : vector<1x8x32xf32> to vector<8x32xf32>
    %2 = arith.truncf %1 : vector<8x32xf32> to vector<8x32xbf16>
    %c0_2 = arith.constant 0 : index
    %c0_3 = arith.constant 0 : index
    %c0_4 = arith.constant 0 : index
    %3 = vector.load %arg3[%c0_2, %c0_3, %c0_4] : memref<1x8x32xf32, #tpu.memory_space<vmem>>, vector<1x8x32xf32>
    %4 = vector.shape_cast %3 : vector<1x8x32xf32> to vector<8x32xf32>
    %5 = arith.truncf %4 : vector<8x32xf32> to vector<8x32xbf16>
    %c0_5 = arith.constant 0 : index
    %c0_6 = arith.constant 0 : index
    %c0_7 = arith.constant 0 : index
    %6 = vector.load %arg4[%c0_5, %c0_6, %c0_7] : memref<1x8x32xf32, #tpu.memory_space<vmem>>, vector<1x8x32xf32>
    %7 = vector.shape_cast %6 : vector<1x8x32xf32> to vector<8x32xf32>
    %8 = arith.truncf %7 : vector<8x32xf32> to vector<8x32xbf16>
    %c0_8 = arith.constant 0 : index
    %c0_9 = arith.constant 0 : index
    %9 = vector.load %arg5[%c0_8, %c0_9] : memref<32x32xbf16, #tpu.memory_space<vmem>>, vector<32x32xbf16>
    %cst = arith.constant dense<0.000000e+00> : vector<8x32xf32>
    %10 = tpu.matmul %2, %9, %cst {dimension_numbers = #tpu.dot_dimension_numbers<[1], [0], [0], [1], [0, 0, 1, 1], [], []>} : vector<8x32xbf16>, vector<32x32xbf16>, vector<8x32xf32> -> vector<8x32xf32>
    %c0_10 = arith.constant 0 : index
    %c0_11 = arith.constant 0 : index
    %11 = vector.load %arg6[%c0_10, %c0_11] : memref<1x32xf32, #tpu.memory_space<vmem>>, vector<1x32xf32>
    %12 = vector.broadcast %11 : vector<1x32xf32> to vector<8x32xf32>
    %13 = arith.addf %10, %12 : vector<8x32xf32>
    %c0_12 = arith.constant 0 : index
    %c0_13 = arith.constant 0 : index
    %14 = vector.load %arg7[%c0_12, %c0_13] : memref<32x32xbf16, #tpu.memory_space<vmem>>, vector<32x32xbf16>
    %cst_14 = arith.constant dense<0.000000e+00> : vector<8x32xf32>
    %15 = tpu.matmul %5, %14, %cst_14 {dimension_numbers = #tpu.dot_dimension_numbers<[1], [0], [0], [1], [0, 0, 1, 1], [], []>} : vector<8x32xbf16>, vector<32x32xbf16>, vector<8x32xf32> -> vector<8x32xf32>
    %c0_15 = arith.constant 0 : index
    %c0_16 = arith.constant 0 : index
    %16 = vector.load %arg8[%c0_15, %c0_16] : memref<1x32xf32, #tpu.memory_space<vmem>>, vector<1x32xf32>
    %17 = vector.broadcast %16 : vector<1x32xf32> to vector<8x32xf32>
    %18 = arith.addf %15, %17 : vector<8x32xf32>
    %c0_17 = arith.constant 0 : index
    %c0_18 = arith.constant 0 : index
    %19 = vector.load %arg9[%c0_17, %c0_18] : memref<32x32xbf16, #tpu.memory_space<vmem>>, vector<32x32xbf16>
    %cst_19 = arith.constant dense<0.000000e+00> : vector<8x32xf32>
    %20 = tpu.matmul %8, %19, %cst_19 {dimension_numbers = #tpu.dot_dimension_numbers<[1], [0], [0], [1], [0, 0, 1, 1], [], []>} : vector<8x32xbf16>, vector<32x32xbf16>, vector<8x32xf32> -> vector<8x32xf32>
    %c0_20 = arith.constant 0 : index
    %c0_21 = arith.constant 0 : index
    %21 = vector.load %arg10[%c0_20, %c0_21] : memref<1x32xf32, #tpu.memory_space<vmem>>, vector<1x32xf32>
    %22 = vector.broadcast %21 : vector<1x32xf32> to vector<8x32xf32>
    %23 = arith.addf %20, %22 : vector<8x32xf32>
    %cst_22 = arith.constant 0.353553385 : f32
    %24 = vector.broadcast %cst_22 : f32 to vector<8x32xf32>
    %25 = arith.mulf %13, %24 : vector<8x32xf32>
    %26 = vector.shape_cast %25 : vector<8x32xf32> to vector<8x4x8xf32>
    %27 = arith.truncf %26 : vector<8x4x8xf32> to vector<8x4x8xbf16>
    %28 = vector.shape_cast %18 : vector<8x32xf32> to vector<8x4x8xf32>
    %29 = arith.truncf %28 : vector<8x4x8xf32> to vector<8x4x8xbf16>
    %30 = vector.shape_cast %23 : vector<8x32xf32> to vector<8x4x8xf32>
    %31 = arith.truncf %30 : vector<8x4x8xf32> to vector<8x4x8xbf16>
    "tpu.trace_start"() <{level = 10 : i32, message = "lhe,she->hls"}> : () -> ()
    %cst_23 = arith.constant dense<0.000000e+00> : vector<4x8x8xf32>
    %32 = tpu.matmul %27, %29, %cst_23 {dimension_numbers = #tpu.dot_dimension_numbers<[2], [2], [0], [0], [0, 1, 0, 0, 1, 0], [1], [1]>} : vector<8x4x8xbf16>, vector<8x4x8xbf16>, vector<4x8x8xf32> -> vector<4x8x8xf32>
    "tpu.trace_stop"() : () -> ()
    %cst_24 = arith.constant dense<0xFF800000> : vector<4x8xf32>
    %33 = vector.multi_reduction <maximumf>, %32, %cst_24 [2] : vector<4x8x8xf32> to vector<4x8xf32>
    %34 = vector.shape_cast %33 : vector<4x8xf32> to vector<4x8x1xf32>
    %35 = vector.broadcast %34 : vector<4x8x1xf32> to vector<4x8x8xf32>
    %36 = arith.subf %32, %35 : vector<4x8x8xf32>
    %37 = arith.truncf %36 : vector<4x8x8xf32> to vector<4x8x8xbf16>
    %38 = math.exp %37 : vector<4x8x8xbf16>
    %39 = arith.extf %38 : vector<4x8x8xbf16> to vector<4x8x8xf32>
    %cst_25 = arith.constant dense<0.000000e+00> : vector<4x8xf32>
    %40 = vector.multi_reduction <add>, %39, %cst_25 [2] : vector<4x8x8xf32> to vector<4x8xf32>
    %41 = vector.shape_cast %40 : vector<4x8xf32> to vector<4x8x1xf32>
    %42 = tpu.reciprocal %41 {approx = true} : vector<4x8x1xf32> -> vector<4x8x1xf32>
    %43 = arith.extf %38 : vector<4x8x8xbf16> to vector<4x8x8xf32>
    %44 = vector.broadcast %42 : vector<4x8x1xf32> to vector<4x8x8xf32>
    %45 = arith.mulf %43, %44 : vector<4x8x8xf32>
    %46 = arith.truncf %45 : vector<4x8x8xf32> to vector<4x8x8xbf16>
    "tpu.trace_start"() <{level = 10 : i32, message = "hls,shd->lhd"}> : () -> ()
    %cst_26 = arith.constant dense<0.000000e+00> : vector<4x8x8xf32>
    %47 = tpu.matmul %31, %46, %cst_26 {dimension_numbers = #tpu.dot_dimension_numbers<[0], [2], [2], [1], [0, 1, 0, 2, 1, 1], [1], [0]>} : vector<8x4x8xbf16>, vector<4x8x8xbf16>, vector<4x8x8xf32> -> vector<4x8x8xf32>
    %48 = tpu.transpose %47, [2, 0, 1] : vector<4x8x8xf32> -> vector<8x4x8xf32>
    "tpu.trace_stop"() : () -> ()
    %49 = vector.shape_cast %48 : vector<8x4x8xf32> to vector<8x32xf32>
    %50 = arith.truncf %49 : vector<8x32xf32> to vector<8x32xbf16>
    %c0_27 = arith.constant 0 : index
    %c0_28 = arith.constant 0 : index
    %51 = vector.load %arg11[%c0_27, %c0_28] : memref<32x32xbf16, #tpu.memory_space<vmem>>, vector<32x32xbf16>
    %cst_29 = arith.constant dense<0.000000e+00> : vector<8x32xf32>
    %52 = tpu.matmul %50, %51, %cst_29 {dimension_numbers = #tpu.dot_dimension_numbers<[1], [0], [0], [1], [0, 0, 1, 1], [], []>} : vector<8x32xbf16>, vector<32x32xbf16>, vector<8x32xf32> -> vector<8x32xf32>
    %c0_30 = arith.constant 0 : index
    %c0_31 = arith.constant 0 : index
    %53 = vector.load %arg12[%c0_30, %c0_31] : memref<1x32xf32, #tpu.memory_space<vmem>>, vector<1x32xf32>
    %54 = vector.broadcast %53 : vector<1x32xf32> to vector<8x32xf32>
    %55 = arith.addf %52, %54 : vector<8x32xf32>
    %c0_32 = arith.constant 0 : index
    %c0_33 = arith.constant 0 : index
    %c0_34 = arith.constant 0 : index
    %56 = vector.load %arg13[%c0_32, %c0_33, %c0_34] : memref<1x8x32xf32, #tpu.memory_space<vmem>>, vector<1x8x32xf32>
    %57 = vector.shape_cast %56 : vector<1x8x32xf32> to vector<8x32xf32>
    %58 = vector.shape_cast %55 : vector<8x32xf32> to vector<1x8x32xf32>
    tpu.vector_store %arg13[%c0_32, %c0_33, %c0_34], %58 {strides = array<i32>} : memref<1x8x32xf32, #tpu.memory_space<vmem>>, vector<1x8x32xf32>,
    %c0_35 = arith.constant 0 : index
    %c0_36 = arith.constant 0 : index
    %c0_37 = arith.constant 0 : index
    %c0_38 = arith.constant 0 : index
    %59 = vector.load %arg14[%c0_35, %c0_36, %c0_37, %c0_38] : memref<1x4x8x8xbf16, #tpu.memory_space<vmem>>, vector<1x4x8x8xbf16>
    %60 = vector.shape_cast %59 : vector<1x4x8x8xbf16> to vector<4x8x8xbf16>
    %61 = vector.shape_cast %46 : vector<4x8x8xbf16> to vector<1x4x8x8xbf16>
    tpu.vector_store %arg14[%c0_35, %c0_36, %c0_37, %c0_38], %61 {strides = array<i32>} : memref<1x4x8x8xbf16, #tpu.memory_space<vmem>>, vector<1x4x8x8xbf16>,
    return
  }
  func.func @transform_0(%arg0: i32, %arg1: i32) -> (i32, i32, i32) {
    %c0_i32 = arith.constant 0 : i32
    %c0_i32_0 = arith.constant 0 : i32
    return %arg0, %arg1, %c0_i32 : i32, i32, i32
  }
  func.func @transform_1(%arg0: i32, %arg1: i32) -> (i32, i32, i32) {
    %c0_i32 = arith.constant 0 : i32
    %c0_i32_0 = arith.constant 0 : i32
    %c0_i32_1 = arith.constant 0 : i32
    return %arg0, %c0_i32, %c0_i32_0 : i32, i32, i32
  }
  func.func @transform_2(%arg0: i32, %arg1: i32) -> (i32, i32, i32) {
    %c0_i32 = arith.constant 0 : i32
    %c0_i32_0 = arith.constant 0 : i32
    %c0_i32_1 = arith.constant 0 : i32
    return %arg0, %c0_i32, %c0_i32_0 : i32, i32, i32
  }
  func.func @transform_3(%arg0: i32, %arg1: i32) -> (i32, i32) {
    %c0_i32 = arith.constant 0 : i32
    %c0_i32_0 = arith.constant 0 : i32
    %c0_i32_1 = arith.constant 0 : i32
    return %c0_i32, %c0_i32_0 : i32, i32
  }
  func.func @transform_4(%arg0: i32, %arg1: i32) -> (i32, i32) {
    %c0_i32 = arith.constant 0 : i32
    %c0_i32_0 = arith.constant 0 : i32
    %c0_i32_1 = arith.constant 0 : i32
    return %c0_i32, %c0_i32_0 : i32, i32
  }
  func.func @transform_5(%arg0: i32, %arg1: i32) -> (i32, i32) {
    %c0_i32 = arith.constant 0 : i32
    %c0_i32_0 = arith.constant 0 : i32
    %c0_i32_1 = arith.constant 0 : i32
    return %c0_i32, %c0_i32_0 : i32, i32
  }
  func.func @transform_6(%arg0: i32, %arg1: i32) -> (i32, i32) {
    %c0_i32 = arith.constant 0 : i32
    %c0_i32_0 = arith.constant 0 : i32
    %c0_i32_1 = arith.constant 0 : i32
    return %c0_i32, %c0_i32_0 : i32, i32
  }
  func.func @transform_7(%arg0: i32, %arg1: i32) -> (i32, i32) {
    %c0_i32 = arith.constant 0 : i32
    %c0_i32_0 = arith.constant 0 : i32
    %c0_i32_1 = arith.constant 0 : i32
    return %c0_i32, %c0_i32_0 : i32, i32
  }
  func.func @transform_8(%arg0: i32, %arg1: i32) -> (i32, i32) {
    %c0_i32 = arith.constant 0 : i32
    %c0_i32_0 = arith.constant 0 : i32
    %c0_i32_1 = arith.constant 0 : i32
    return %c0_i32, %c0_i32_0 : i32, i32
  }
  func.func @transform_9(%arg0: i32, %arg1: i32) -> (i32, i32) {
    %c0_i32 = arith.constant 0 : i32
    %c0_i32_0 = arith.constant 0 : i32
    %c0_i32_1 = arith.constant 0 : i32
    return %c0_i32, %c0_i32_0 : i32, i32
  }
  func.func @transform_10(%arg0: i32, %arg1: i32) -> (i32, i32) {
    %c0_i32 = arith.constant 0 : i32
    %c0_i32_0 = arith.constant 0 : i32
    %c0_i32_1 = arith.constant 0 : i32
    return %c0_i32, %c0_i32_0 : i32, i32
  }
  func.func @transform_11(%arg0: i32, %arg1: i32) -> (i32, i32, i32) {
    %c0_i32 = arith.constant 0 : i32
    %c0_i32_0 = arith.constant 0 : i32
    return %arg0, %arg1, %c0_i32 : i32, i32, i32
  }
  func.func @transform_12(%arg0: i32, %arg1: i32) -> (i32, i32, i32, i32) {
    %c0_i32 = arith.constant 0 : i32
    %c0_i32_0 = arith.constant 0 : i32
    %c0_i32_1 = arith.constant 0 : i32
    return %arg0, %c0_i32, %arg1, %c0_i32_0 : i32, i32, i32, i32
  }
}

</mosaic_0001>

<llo_original>
// kernel: tpu_custom_call.1
$region0: #{tpu_custom_call.1}
  #allocation0 [shape = 'u32[]', space=smem, size = 0x4, offset = 0x4, fixed_abs, tag = 'smem constant byte address 0x4 - core index']
  #allocation1 [shape = 'u32[144,128]{1,0:T(1,128)}', space=vmem, size = 0x12000, scoped, tag = 'internal scratch']
  %s0 = inlined_call_operand.hbm [shape: f32[2,16,32], index: 0, kind: input, shape index: {}]
  %s1 = inlined_call_operand.hbm [shape: f32[2,8,32], index: 1, kind: input, shape index: {}]
  %s2 = inlined_call_operand.hbm [shape: f32[2,8,32], index: 2, kind: input, shape index: {}]
  %s3 = inlined_call_operand.hbm [shape: bf16[32,32], index: 3, kind: input, shape index: {}]
  %s4 = inlined_call_operand.vmem [shape: f32[1,32], index: 4, kind: input, shape index: {}]
  %s5 = inlined_call_operand.vmem [shape: bf16[32,32], index: 5, kind: input, shape index: {}]
  %s6 = inlined_call_operand.vmem [shape: f32[1,32], index: 6, kind: input, shape index: {}]
  %s7 = inlined_call_operand.hbm [shape: bf16[32,32], index: 7, kind: input, shape index: {}]
  %s8 = inlined_call_operand.hbm [shape: f32[1,32], index: 8, kind: input, shape index: {}]
  %s9 = inlined_call_operand.vmem [shape: bf16[32,32], index: 9, kind: input, shape index: {}]
  %s10 = inlined_call_operand.vmem [shape: f32[1,32], index: 10, kind: input, shape index: {}]
  %s11 = inlined_call_operand.hbm [shape: f32[2,16,32], index: 11, kind: output, shape index: {0}]
  %s12 = inlined_call_operand.vmem [shape: bf16[2,4,16,8], index: 12, kind: output, shape index: {1}]
  %13 = xla_tuple %s11, %s12
  %s14 = sld [smem:[#allocation0]]
  $region146: #{tpu_custom_call.1} parent=0
    _
  %s16 = ssub.s32 1, %s14
  %s17 = scalar_select 0, %s16, %s14
  $region1: #{tpu_custom_call.1} parent=0
    #allocation2 [shape = 'u8[8192]{0}', space=vmem, size = 0x2000, scoped, tag = 'input window, operand 0']
    #allocation3 [shape = 's32[2]{0}', space=sflag, size = 0x8, scoped, tag = 'scoped memory for tpu_custom_call.1']
    #allocation4 [shape = 's32[2]{0}', space=sflag, size = 0x8, scoped, tag = 'scoped memory for tpu_custom_call.1']
    #allocation5 [shape = 'u8[8192]{0}', space=vmem, size = 0x2000, scoped, tag = 'input window, operand 1']
    #allocation6 [shape = 's32[2]{0}', space=sflag, size = 0x8, scoped, tag = 'scoped memory for tpu_custom_call.1']
    #allocation7 [shape = 'u8[8192]{0}', space=vmem, size = 0x2000, scoped, tag = 'input window, operand 2']
    #allocation8 [shape = 'u8[8192]{0}', space=vmem, size = 0x2000, scoped, tag = 'input window, operand 3, single buffered']
    #allocation9 [shape = 's32[1]{0}', space=sflag, size = 0x4, scoped, tag = 'scoped memory for tpu_custom_call.1']
    #allocation10 [shape = 'u8[8192]{0}', space=vmem, size = 0x2000, scoped, tag = 'input window, operand 7, single buffered']
    #allocation11 [shape = 'u8[512]{0}', space=vmem, size = 0x400, scoped, tag = 'input window, operand 8, single buffered']
    #allocation12 [shape = 's32[1]{0}', space=sflag, size = 0x4, scoped, tag = 'scoped memory for tpu_custom_call.1']
    #allocation13 [shape = 'u8[8192]{0}', space=vmem, size = 0x2000, scoped, tag = 'output window, operand 0']
    #allocation14 [shape = 'u8[16384]{0}', space=vmem, size = 0x4000, scoped, tag = 'output window, operand 1']
    %18 = vsyncpa [#allocation3], 0
    %s19 = scalar_lea.sflag [#allocation3], 1
    %20 = vsyncpa %s19, 0
    %21 = vsyncpa [#allocation6], 0
    %s22 = scalar_lea.sflag [#allocation6], 1
    %23 = vsyncpa %s22, 0
    %24 = vsyncpa [#allocation9], 0
    %25 = vsyncpa [#allocation12], 0
    %26 = vsyncpa [#allocation4], 0
    %s27 = scalar_lea.sflag [#allocation4], 1
    %28 = vsyncpa %s27, 0
    loop: start=0, step=1, limit=6
    $region2: #{tpu_custom_call.1} parent=1 // loop_pre_header
      _
    $region3: #{tpu_custom_call.1} parent=1 // loop_header
      %s30 = sphi 0, %s34
      %p31 = scmp.ge.s32.totalorder %s30, 6
      %s37 = sphi 0, %s49
      %s38 = sphi 0, %s45
      %s39 = sphi 0, %s37
      %s40 = sphi 0, %s38
      %s41 = sphi 0, %s39
      %s42 = sphi 0, %s40
      %s54 = sphi 0, %s56
      %s57 = sphi 0, %s54
      %s58 = sphi 0, %s57
      %s74 = sphi 0, %s58
      %s80 = sphi 0, %s82
      %s83 = sphi 0, %s80
      %s84 = sphi 0, %s83
      %s100 = sphi 0, %s84
      %s106 = sphi 0, %s108
      %s109 = sphi 0, %s106
      %s110 = sphi 0, %s109
      %s126 = sphi 0, %s110
      %s130 = sphi 0, %s130
      %s132 = sphi 0, %s130
      %s133 = sphi 0, %s132
      %s147 = sphi 0, %s133
      %s151 = sphi 0, %s151
      %s153 = sphi 0, %s151
      %s154 = sphi 0, %s153
      %s168 = sphi 0, %s154
      %s172 = sphi 0, %s172
      %s174 = sphi 0, %s172
      %s175 = sphi 0, %s174
      %s189 = sphi 0, %s175
      %s193 = sphi 0, %s193
      %s195 = sphi 0, %s193
      %s196 = sphi 0, %s195
      %s210 = sphi 0, %s196
      %s214 = sphi 0, %s214
      %s216 = sphi 0, %s214
      %s217 = sphi 0, %s216
      %s231 = sphi 0, %s217
      %s235 = sphi 0, %s235
      %s237 = sphi 0, %s235
      %s238 = sphi 0, %s237
      %s252 = sphi 0, %s238
      %s256 = sphi 0, %s256
      %s258 = sphi 0, %s256
      %s259 = sphi 0, %s258
      %s273 = sphi 0, %s259
      %s277 = sphi 0, %s277
      %s279 = sphi 0, %s277
      %s280 = sphi 0, %s279
      %s294 = sphi 0, %s280
      %s302 = sphi 0, %s304
      %s305 = sphi 0, %s302
      %s306 = sphi 0, %s305
      %s322 = sphi 0, %s306
      %s330 = sphi 0, %s332
      %s333 = sphi 0, %s330
      %s334 = sphi 0, %s333
      %s350 = sphi 0, %s334
    $region4: #{tpu_custom_call.1} parent=1 // loop_header_branch
      %33 = sbr.rel (%p31) target = $region8
    $region5: #{tpu_custom_call.1} parent=1 // loop_body
      %s35 = ssub.s32 %s30, 1
      %s36 = ssub.s32 %s30, 2
      %s43 = sadd.s32 1, %s38
      %p44 = scmp.ge.s32.totalorder %s43, 2
      %s45 = scalar_select %p44, 0, %s43
      %s46 = sadd.s32 1, %s37
      %s47 = scalar_select %p44, %s46, %s37
      %p48 = scmp.ge.s32.totalorder %s47, 2
      %s49 = scalar_select %p48, 0, %s47
      %s50 = ssub.s32 %s37, %s49
      %s51 = ssub.s32 %s38, %s45
      %s52 = sor.u32 %s50, %s51
      %p53 = scmp.eq.s32.totalorder %s52, 0
      %s55 = sadd.s32 %s54, 1
      %s56 = scalar_select %p53, %s54, %s55
      %p59 = pneg %p53
      %p60 = scmp.eq.s32.totalorder %s30, 3
      %p61 = por %p59, %p60
      %p62 = scmp.ne.s32.totalorder %s54, %s57
      %p63 = scmp.eq.s32.totalorder %s30, 0
      %p64 = por %p62, %p63
      %p65 = scmp.ne.s32.totalorder %s54, %s57
      %p66 = scmp.eq.s32.totalorder %s35, 3
      %p67 = por %p65, %p66
      %p68 = scmp.ne.s32.totalorder %s57, %s58
      %p69 = scmp.eq.s32.totalorder %s35, 0
      %p70 = por %p68, %p69
      %p71 = scmp.ne.s32.totalorder %s57, %s58
      %p72 = scmp.eq.s32.totalorder %s36, 3
      %p73 = por %p71, %p72
      %p75 = scmp.ne.s32.totalorder %s58, %s74
      %p76 = scmp.eq.s32.totalorder %s36, 0
      %p77 = por %p75, %p76
      %s78 = ssub.s32 %s37, %s49
      %p79 = scmp.eq.s32.totalorder %s78, 0
      %s81 = sadd.s32 %s80, 1
      %s82 = scalar_select %p79, %s80, %s81
      %p85 = pneg %p79
      %p86 = scmp.eq.s32.totalorder %s30, 3
      %p87 = por %p85, %p86
      %p88 = scmp.ne.s32.totalorder %s80, %s83
      %p89 = scmp.eq.s32.totalorder %s30, 0
      %p90 = por %p88, %p89
      %p91 = scmp.ne.s32.totalorder %s80, %s83
      %p92 = scmp.eq.s32.totalorder %s35, 3
      %p93 = por %p91, %p92
      %p94 = scmp.ne.s32.totalorder %s83, %s84
      %p95 = scmp.eq.s32.totalorder %s35, 0
      %p96 = por %p94, %p95
      %p97 = scmp.ne.s32.totalorder %s83, %s84
      %p98 = scmp.eq.s32.totalorder %s36, 3
      %p99 = por %p97, %p98
      %p101 = scmp.ne.s32.totalorder %s84, %s100
      %p102 = scmp.eq.s32.totalorder %s36, 0
      %p103 = por %p101, %p102
      %s104 = ssub.s32 %s37, %s49
      %p105 = scmp.eq.s32.totalorder %s104, 0
      %s107 = sadd.s32 %s106, 1
      %s108 = scalar_select %p105, %s106, %s107
      %p111 = pneg %p105
      %p112 = scmp.eq.s32.totalorder %s30, 3
      %p113 = por %p111, %p112
      %p114 = scmp.ne.s32.totalorder %s106, %s109
      %p115 = scmp.eq.s32.totalorder %s30, 0
      %p116 = por %p114, %p115
      %p117 = scmp.ne.s32.totalorder %s106, %s109
      %p118 = scmp.eq.s32.totalorder %s35, 3
      %p119 = por %p117, %p118
      %p120 = scmp.ne.s32.totalorder %s109, %s110
      %p121 = scmp.eq.s32.totalorder %s35, 0
      %p122 = por %p120, %p121
      %p123 = scmp.ne.s32.totalorder %s109, %s110
      %p124 = scmp.eq.s32.totalorder %s36, 3
      %p125 = por %p123, %p124
      %p127 = scmp.ne.s32.totalorder %s110, %s126
      %p128 = scmp.eq.s32.totalorder %s36, 0
      %p129 = por %p127, %p128
      %s131 = sadd.s32 %s130, 1
      %p134 = scmp.eq.s32.totalorder %s30, 3
      %p135 = scmp.ne.s32.totalorder %s130, %s132
      %p136 = scmp.eq.s32.totalorder %s30, 0
      %p137 = por %p135, %p136
      %p138 = scmp.ne.s32.totalorder %s130, %s132
      %p139 = scmp.eq.s32.totalorder %s35, 3
      %p140 = por %p138, %p139
      %p141 = scmp.ne.s32.totalorder %s132, %s133
      %p142 = scmp.eq.s32.totalorder %s35, 0
      %p143 = por %p141, %p142
      %p144 = scmp.ne.s32.totalorder %s132, %s133
      %p145 = scmp.eq.s32.totalorder %s36, 3
      %p146 = por %p144, %p145
      %p148 = scmp.ne.s32.totalorder %s133, %s147
      %p149 = scmp.eq.s32.totalorder %s36, 0
      %p150 = por %p148, %p149
      %s152 = sadd.s32 %s151, 1
      %p155 = scmp.eq.s32.totalorder %s30, 3
      %p156 = scmp.ne.s32.totalorder %s151, %s153
      %p157 = scmp.eq.s32.totalorder %s30, 0
      %p158 = por %p156, %p157
      %p159 = scmp.ne.s32.totalorder %s151, %s153
      %p160 = scmp.eq.s32.totalorder %s35, 3
      %p161 = por %p159, %p160
      %p162 = scmp.ne.s32.totalorder %s153, %s154
      %p163 = scmp.eq.s32.totalorder %s35, 0
      %p164 = por %p162, %p163
      %p165 = scmp.ne.s32.totalorder %s153, %s154
      %p166 = scmp.eq.s32.totalorder %s36, 3
      %p167 = por %p165, %p166
      %p169 = scmp.ne.s32.totalorder %s154, %s168
      %p170 = scmp.eq.s32.totalorder %s36, 0
      %p171 = por %p169, %p170
      %s173 = sadd.s32 %s172, 1
      %p176 = scmp.eq.s32.totalorder %s30, 3
      %p177 = scmp.ne.s32.totalorder %s172, %s174
      %p178 = scmp.eq.s32.totalorder %s30, 0
      %p179 = por %p177, %p178
      %p180 = scmp.ne.s32.totalorder %s172, %s174
      %p181 = scmp.eq.s32.totalorder %s35, 3
      %p182 = por %p180, %p181
      %p183 = scmp.ne.s32.totalorder %s174, %s175
      %p184 = scmp.eq.s32.totalorder %s35, 0
      %p185 = por %p183, %p184
      %p186 = scmp.ne.s32.totalorder %s174, %s175
      %p187 = scmp.eq.s32.totalorder %s36, 3
      %p188 = por %p186, %p187
      %p190 = scmp.ne.s32.totalorder %s175, %s189
      %p191 = scmp.eq.s32.totalorder %s36, 0
      %p192 = por %p190, %p191
      %s194 = sadd.s32 %s193, 1
      %p197 = scmp.eq.s32.totalorder %s30, 3
      %p198 = scmp.ne.s32.totalorder %s193, %s195
      %p199 = scmp.eq.s32.totalorder %s30, 0
      %p200 = por %p198, %p199
      %p201 = scmp.ne.s32.totalorder %s193, %s195
      %p202 = scmp.eq.s32.totalorder %s35, 3
      %p203 = por %p201, %p202
      %p204 = scmp.ne.s32.totalorder %s195, %s196
      %p205 = scmp.eq.s32.totalorder %s35, 0
      %p206 = por %p204, %p205
      %p207 = scmp.ne.s32.totalorder %s195, %s196
      %p208 = scmp.eq.s32.totalorder %s36, 3
      %p209 = por %p207, %p208
      %p211 = scmp.ne.s32.totalorder %s196, %s210
      %p212 = scmp.eq.s32.totalorder %s36, 0
      %p213 = por %p211, %p212
      %s215 = sadd.s32 %s214, 1
      %p218 = scmp.eq.s32.totalorder %s30, 3
      %p219 = scmp.ne.s32.totalorder %s214, %s216
      %p220 = scmp.eq.s32.totalorder %s30, 0
      %p221 = por %p219, %p220
      %p222 = scmp.ne.s32.totalorder %s214, %s216
      %p223 = scmp.eq.s32.totalorder %s35, 3
      %p224 = por %p222, %p223
      %p225 = scmp.ne.s32.totalorder %s216, %s217
      %p226 = scmp.eq.s32.totalorder %s35, 0
      %p227 = por %p225, %p226
      %p228 = scmp.ne.s32.totalorder %s216, %s217
      %p229 = scmp.eq.s32.totalorder %s36, 3
      %p230 = por %p228, %p229
      %p232 = scmp.ne.s32.totalorder %s217, %s231
      %p233 = scmp.eq.s32.totalorder %s36, 0
      %p234 = por %p232, %p233
      %s236 = sadd.s32 %s235, 1
      %p239 = scmp.eq.s32.totalorder %s30, 3
      %p240 = scmp.ne.s32.totalorder %s235, %s237
      %p241 = scmp.eq.s32.totalorder %s30, 0
      %p242 = por %p240, %p241
      %p243 = scmp.ne.s32.totalorder %s235, %s237
      %p244 = scmp.eq.s32.totalorder %s35, 3
      %p245 = por %p243, %p244
      %p246 = scmp.ne.s32.totalorder %s237, %s238
      %p247 = scmp.eq.s32.totalorder %s35, 0
      %p248 = por %p246, %p247
      %p249 = scmp.ne.s32.totalorder %s237, %s238
      %p250 = scmp.eq.s32.totalorder %s36, 3
      %p251 = por %p249, %p250
      %p253 = scmp.ne.s32.totalorder %s238, %s252
      %p254 = scmp.eq.s32.totalorder %s36, 0
      %p255 = por %p253, %p254
      %s257 = sadd.s32 %s256, 1
      %p260 = scmp.eq.s32.totalorder %s30, 3
      %p261 = scmp.ne.s32.totalorder %s256, %s258
      %p262 = scmp.eq.s32.totalorder %s30, 0
      %p263 = por %p261, %p262
      %p264 = scmp.ne.s32.totalorder %s256, %s258
      %p265 = scmp.eq.s32.totalorder %s35, 3
      %p266 = por %p264, %p265
      %p267 = scmp.ne.s32.totalorder %s258, %s259
      %p268 = scmp.eq.s32.totalorder %s35, 0
      %p269 = por %p267, %p268
      %p270 = scmp.ne.s32.totalorder %s258, %s259
      %p271 = scmp.eq.s32.totalorder %s36, 3
      %p272 = por %p270, %p271
      %p274 = scmp.ne.s32.totalorder %s259, %s273
      %p275 = scmp.eq.s32.totalorder %s36, 0
      %p276 = por %p274, %p275
      %s278 = sadd.s32 %s277, 1
      %p281 = scmp.eq.s32.totalorder %s30, 3
      %p282 = scmp.ne.s32.totalorder %s277, %s279
      %p283 = scmp.eq.s32.totalorder %s30, 0
      %p284 = por %p282, %p283
      %p285 = scmp.ne.s32.totalorder %s277, %s279
      %p286 = scmp.eq.s32.totalorder %s35, 3
      %p287 = por %p285, %p286
      %p288 = scmp.ne.s32.totalorder %s279, %s280
      %p289 = scmp.eq.s32.totalorder %s35, 0
      %p290 = por %p288, %p289
      %p291 = scmp.ne.s32.totalorder %s279, %s280
      %p292 = scmp.eq.s32.totalorder %s36, 3
      %p293 = por %p291, %p292
      %p295 = scmp.ne.s32.totalorder %s280, %s294
      %p296 = scmp.eq.s32.totalorder %s36, 0
      %p297 = por %p295, %p296
      %s298 = ssub.s32 %s37, %s49
      %s299 = ssub.s32 %s38, %s45
      %s300 = sor.u32 %s298, %s299
      %p301 = scmp.eq.s32.totalorder %s300, 0
      %s303 = sadd.s32 %s302, 1
      %s304 = scalar_select %p301, %s302, %s303
      %p307 = pneg %p301
      %p308 = scmp.eq.s32.totalorder %s30, 3
      %p309 = por %p307, %p308
      %p310 = scmp.ne.s32.totalorder %s302, %s305
      %p311 = scmp.eq.s32.totalorder %s30, 0
      %p312 = por %p310, %p311
      %p313 = scmp.ne.s32.totalorder %s302, %s305
      %p314 = scmp.eq.s32.totalorder %s35, 3
      %p315 = por %p313, %p314
      %p316 = scmp.ne.s32.totalorder %s305, %s306
      %p317 = scmp.eq.s32.totalorder %s35, 0
      %p318 = por %p316, %p317
      %p319 = scmp.ne.s32.totalorder %s305, %s306
      %p320 = scmp.eq.s32.totalorder %s36, 3
      %p321 = por %p319, %p320
      %p323 = scmp.ne.s32.totalorder %s306, %s322
      %p324 = scmp.eq.s32.totalorder %s36, 0
      %p325 = por %p323, %p324
      %s326 = ssub.s32 %s37, %s49
      %s327 = ssub.s32 %s38, %s45
      %s328 = sor.u32 %s326, %s327
      %p329 = scmp.eq.s32.totalorder %s328, 0
      %s331 = sadd.s32 %s330, 1
      %s332 = scalar_select %p329, %s330, %s331
      %p335 = pneg %p329
      %p336 = scmp.eq.s32.totalorder %s30, 3
      %p337 = por %p335, %p336
      %p338 = scmp.ne.s32.totalorder %s330, %s333
      %p339 = scmp.eq.s32.totalorder %s30, 0
      %p340 = por %p338, %p339
      %p341 = scmp.ne.s32.totalorder %s330, %s333
      %p342 = scmp.eq.s32.totalorder %s35, 3
      %p343 = por %p341, %p342
      %p344 = scmp.ne.s32.totalorder %s333, %s334
      %p345 = scmp.eq.s32.totalorder %s35, 0
      %p346 = por %p344, %p345
      %p347 = scmp.ne.s32.totalorder %s333, %s334
      %p348 = scmp.eq.s32.totalorder %s36, 3
      %p349 = por %p347, %p348
      %p351 = scmp.ne.s32.totalorder %s334, %s350
      %p352 = scmp.eq.s32.totalorder %s36, 0
      %p353 = por %p351, %p352
      %p354 = scmp.le.s32.totalorder 1, %s30
      %p355 = scmp.lt.s32.totalorder %s30, 5
      %p356 = pnand %p354, %p355
      %p357 = pneg %p356
      // Predicated region
      $region9: #{tpu_custom_call.1} parent=5 // pred_check
        _
      $region10: #{tpu_custom_call.1} parent=5 // pred_check_branch
        %359 = sbr.rel (%p356) target = $region12
      $region11: #{tpu_custom_call.1} parent=5 // pred_region
        %s360 = ssub.s32 %s30, 1
        // Predicated region
        $region13: #{tpu_custom_call.1} parent=11 // pred_check
          %p361 = pneg %p143
        $region14: #{tpu_custom_call.1} parent=11 // pred_check_branch
          %363 = sbr.rel (%p361) target = $region16
        $region15: #{tpu_custom_call.1} parent=11 // pred_region
          %s365 = ssub.s32 256, 256
          %366 = vsyncadd [#allocation9], %s365
          %s367 = sshll.u32 [#allocation8], 4
          %s368 = int_to_ptr.vmem [resolvable:$true] %s367
          %373 = dma.hbm_to_vmem [thread:$0]  %s3, 256, %s368, [#allocation9], 64, 64, 4
        $region16: #{tpu_custom_call.1} parent=11 // pred_fallthru
          _
        // Predicated region
        $region17: #{tpu_custom_call.1} parent=11 // pred_check
          %p374 = pneg %p164
        $region18: #{tpu_custom_call.1} parent=11 // pred_check_branch
          %376 = sbr.rel (%p374) target = $region20
        $region19: #{tpu_custom_call.1} parent=11 // pred_region
          _
        $region20: #{tpu_custom_call.1} parent=11 // pred_fallthru
          _
        // Predicated region
        $region21: #{tpu_custom_call.1} parent=11 // pred_check
          %p377 = pneg %p185
        $region22: #{tpu_custom_call.1} parent=11 // pred_check_branch
          %379 = sbr.rel (%p377) target = $region24
        $region23: #{tpu_custom_call.1} parent=11 // pred_region
          _
        $region24: #{tpu_custom_call.1} parent=11 // pred_fallthru
          _
        // Predicated region
        $region25: #{tpu_custom_call.1} parent=11 // pred_check
          %p380 = pneg %p206
        $region26: #{tpu_custom_call.1} parent=11 // pred_check_branch
          %382 = sbr.rel (%p380) target = $region28
        $region27: #{tpu_custom_call.1} parent=11 // pred_region
          _
        $region28: #{tpu_custom_call.1} parent=11 // pred_fallthru
          _
        // Predicated region
        $region29: #{tpu_custom_call.1} parent=11 // pred_check
          %p383 = pneg %p227
        $region30: #{tpu_custom_call.1} parent=11 // pred_check_branch
          %385 = sbr.rel (%p383) target = $region32
        $region31: #{tpu_custom_call.1} parent=11 // pred_region
          %s387 = ssub.s32 256, 256
          %388 = vsyncadd [#allocation9], %s387
          %s389 = sshll.u32 [#allocation10], 4
          %s390 = int_to_ptr.vmem [resolvable:$true] %s389
          %395 = dma.hbm_to_vmem [thread:$0]  %s7, 256, %s390, [#allocation9], 64, 64, 4
        $region32: #{tpu_custom_call.1} parent=11 // pred_fallthru
          _
        // Predicated region
        $region33: #{tpu_custom_call.1} parent=11 // pred_check
          %p396 = pneg %p248
        $region34: #{tpu_custom_call.1} parent=11 // pred_check_branch
          %398 = sbr.rel (%p396) target = $region36
        $region35: #{tpu_custom_call.1} parent=11 // pred_region
          %s400 = ssub.s32 16, 16
          %401 = vsyncadd [#allocation12], %s400
          %s403 = sshll.u32 [#allocation11], 4
          %s404 = int_to_ptr.vmem [resolvable:$true] %s403
          %406 = dma.hbm_to_vmem [thread:$0]  %s8, 16, %s404, [#allocation12]
        $region36: #{tpu_custom_call.1} parent=11 // pred_fallthru
          _
        // Predicated region
        $region37: #{tpu_custom_call.1} parent=11 // pred_check
          %p407 = pneg %p269
        $region38: #{tpu_custom_call.1} parent=11 // pred_check_branch
          %409 = sbr.rel (%p407) target = $region40
        $region39: #{tpu_custom_call.1} parent=11 // pred_region
          _
        $region40: #{tpu_custom_call.1} parent=11 // pred_fallthru
          _
        // Predicated region
        $region41: #{tpu_custom_call.1} parent=11 // pred_check
          %p410 = pneg %p290
        $region42: #{tpu_custom_call.1} parent=11 // pred_check_branch
          %412 = sbr.rel (%p410) target = $region44
        $region43: #{tpu_custom_call.1} parent=11 // pred_region
          _
        $region44: #{tpu_custom_call.1} parent=11 // pred_fallthru
          _
      $region12: #{tpu_custom_call.1} parent=5 // pred_fallthru
        _
      %p413 = scmp.lt.s32.totalorder %s30, 4
      // Predicated region
      $region45: #{tpu_custom_call.1} parent=5 // pred_check
        %p414 = pneg %p413
      $region46: #{tpu_custom_call.1} parent=5 // pred_check_branch
        %416 = sbr.rel (%p414) target = $region48
      $region47: #{tpu_custom_call.1} parent=5 // pred_region
        // Predicated region
        $region49: #{tpu_custom_call.1} parent=47 // pred_check
          %p417 = pneg %p64
        $region50: #{tpu_custom_call.1} parent=47 // pred_check_branch
          %419 = sbr.rel (%p417) target = $region52
        $region51: #{tpu_custom_call.1} parent=47 // pred_region
          %s420 = sand.u32 %s54, 1
          %s421 = scalar_lea.sflag [#allocation3], %s420
          %s422 = sand.u32 %s54, 1
          %s423 = smul.addr %s422, 8
          %s424 = scalar_lea.vmem [#allocation2], %s423
          %s426 = ssub.s32 128, 128
          %427 = vsyncadd %s421, %s426
          %s428 = smul.addr %s37, 2
          %s429 = sadd.s32 %s38, %s428
          %s430 = smul.addr %s429, 128
          %s431 = scalar_lea.hbm %s0, %s430
          %s433 = sshll.u32 %s424, 4
          %s434 = int_to_ptr.vmem [resolvable:$true] %s433
          %436 = dma.hbm_to_vmem [thread:$0]  %s431, 128, %s434, %s421
        $region52: #{tpu_custom_call.1} parent=47 // pred_fallthru
          _
        // Predicated region
        $region53: #{tpu_custom_call.1} parent=47 // pred_check
          %p437 = pneg %p90
        $region54: #{tpu_custom_call.1} parent=47 // pred_check_branch
          %439 = sbr.rel (%p437) target = $region56
        $region55: #{tpu_custom_call.1} parent=47 // pred_region
          %s440 = sand.u32 %s30, 1
          %s441 = scalar_lea.sflag [#allocation6], %s440
          %s442 = sand.u32 %s80, 1
          %s443 = smul.addr %s442, 8
          %s444 = scalar_lea.vmem [#allocation5], %s443
          %s446 = ssub.s32 128, 128
          %447 = vsyncadd %s441, %s446
          %s448 = smul.addr %s37, 128
          %s449 = scalar_lea.hbm %s1, %s448
          %s451 = sshll.u32 %s444, 4
          %s452 = int_to_ptr.vmem [resolvable:$true] %s451
          %454 = dma.hbm_to_vmem [thread:$0]  %s449, 128, %s452, %s441
        $region56: #{tpu_custom_call.1} parent=47 // pred_fallthru
          _
        // Predicated region
        $region57: #{tpu_custom_call.1} parent=47 // pred_check
          %p455 = pneg %p116
        $region58: #{tpu_custom_call.1} parent=47 // pred_check_branch
          %457 = sbr.rel (%p455) target = $region60
        $region59: #{tpu_custom_call.1} parent=47 // pred_region
          %s458 = sand.u32 %s30, 1
          %s459 = scalar_lea.sflag [#allocation6], %s458
          %s460 = sand.u32 %s106, 1
          %s461 = smul.addr %s460, 8
          %s462 = scalar_lea.vmem [#allocation7], %s461
          %s464 = ssub.s32 128, 128
          %465 = vsyncadd %s459, %s464
          %s466 = smul.addr %s37, 128
          %s467 = scalar_lea.hbm %s2, %s466
          %s469 = sshll.u32 %s462, 4
          %s470 = int_to_ptr.vmem [resolvable:$true] %s469
          %472 = dma.hbm_to_vmem [thread:$0]  %s467, 128, %s470, %s459
        $region60: #{tpu_custom_call.1} parent=47 // pred_fallthru
          _
      $region48: #{tpu_custom_call.1} parent=5 // pred_fallthru
        _
      %p473 = scmp.le.s32.totalorder 1, %s30
      %p474 = scmp.lt.s32.totalorder %s30, 5
      %p475 = pnand %p473, %p474
      %p476 = pneg %p475
      // Predicated region
      $region61: #{tpu_custom_call.1} parent=5 // pred_check
        _
      $region62: #{tpu_custom_call.1} parent=5 // pred_check_branch
        %478 = sbr.rel (%p475) target = $region64
      $region63: #{tpu_custom_call.1} parent=5 // pred_region
        %s479 = ssub.s32 %s30, 1
        %s480 = sand.u32 %s57, 1
        %s481 = scalar_lea.sflag [#allocation3], %s480
        %s482 = sand.u32 %s57, 1
        %s483 = smul.addr %s482, 8
        %s484 = scalar_lea.vmem [#allocation2], %s483
        // Predicated region
        $region65: #{tpu_custom_call.1} parent=63 // pred_check
          %p485 = pneg %p70
        $region66: #{tpu_custom_call.1} parent=63 // pred_check_branch
          %487 = sbr.rel (%p485) target = $region68
        $region67: #{tpu_custom_call.1} parent=63 // pred_region
          %488 = dma.done %s481, 128
        $region68: #{tpu_custom_call.1} parent=63 // pred_fallthru
          _
        %s489 = sand.u32 %s35, 1
        %s490 = scalar_lea.sflag [#allocation6], %s489
        %s491 = sand.u32 %s83, 1
        %s492 = smul.addr %s491, 8
        %s493 = scalar_lea.vmem [#allocation5], %s492
        // Predicated region
        $region69: #{tpu_custom_call.1} parent=63 // pred_check
          %p494 = pneg %p96
        $region70: #{tpu_custom_call.1} parent=63 // pred_check_branch
          %496 = sbr.rel (%p494) target = $region72
        $region71: #{tpu_custom_call.1} parent=63 // pred_region
          %497 = dma.done %s490, 128
        $region72: #{tpu_custom_call.1} parent=63 // pred_fallthru
          _
        %s498 = sand.u32 %s35, 1
        %s499 = scalar_lea.sflag [#allocation6], %s498
        %s500 = sand.u32 %s109, 1
        %s501 = smul.addr %s500, 8
        %s502 = scalar_lea.vmem [#allocation7], %s501
        // Predicated region
        $region73: #{tpu_custom_call.1} parent=63 // pred_check
          %p503 = pneg %p122
        $region74: #{tpu_custom_call.1} parent=63 // pred_check_branch
          %505 = sbr.rel (%p503) target = $region76
        $region75: #{tpu_custom_call.1} parent=63 // pred_region
          %506 = dma.done %s499, 128
        $region76: #{tpu_custom_call.1} parent=63 // pred_fallthru
          _
        // Predicated region
        $region77: #{tpu_custom_call.1} parent=63 // pred_check
          %p507 = pneg %p143
        $region78: #{tpu_custom_call.1} parent=63 // pred_check_branch
          %509 = sbr.rel (%p507) target = $region80
        $region79: #{tpu_custom_call.1} parent=63 // pred_region
          %510 = dma.done [#allocation9], 256
        $region80: #{tpu_custom_call.1} parent=63 // pred_fallthru
          _
        // Predicated region
        $region81: #{tpu_custom_call.1} parent=63 // pred_check
          %p511 = pneg %p227
        $region82: #{tpu_custom_call.1} parent=63 // pred_check_branch
          %513 = sbr.rel (%p511) target = $region84
        $region83: #{tpu_custom_call.1} parent=63 // pred_region
          %514 = dma.done [#allocation9], 256
        $region84: #{tpu_custom_call.1} parent=63 // pred_fallthru
          _
        // Predicated region
        $region85: #{tpu_custom_call.1} parent=63 // pred_check
          %p515 = pneg %p248
        $region86: #{tpu_custom_call.1} parent=63 // pred_check_branch
          %517 = sbr.rel (%p515) target = $region88
        $region87: #{tpu_custom_call.1} parent=63 // pred_region
          %518 = dma.done [#allocation12], 16
        $region88: #{tpu_custom_call.1} parent=63 // pred_fallthru
          _
        %s519 = sand.u32 %s57, 1
        %s520 = scalar_lea.sflag [#allocation3], %s519
        %s521 = sand.u32 %s57, 1
        %s522 = smul.addr %s521, 8
        %s523 = scalar_lea.vmem [#allocation2], %s522
        %p524 = pneg %p70
        %p525 = pneg %p67
        %s526 = sand.u32 %s35, 1
        %s527 = scalar_lea.sflag [#allocation6], %s526
        %s528 = sand.u32 %s83, 1
        %s529 = smul.addr %s528, 8
        %s530 = scalar_lea.vmem [#allocation5], %s529
        %p531 = pneg %p96
        %p532 = pneg %p93
        %s533 = sand.u32 %s35, 1
        %s534 = scalar_lea.sflag [#allocation6], %s533
        %s535 = sand.u32 %s109, 1
        %s536 = smul.addr %s535, 8
        %s537 = scalar_lea.vmem [#allocation7], %s536
        %p538 = pneg %p122
        %p539 = pneg %p119
        %p540 = pneg %p143
        %p541 = pneg %p140
        %p542 = pneg %p164
        %p543 = pneg %p161
        %p544 = pneg %p185
        %p545 = pneg %p182
        %p546 = pneg %p206
        %p547 = pneg %p203
        %p548 = pneg %p227
        %p549 = pneg %p224
        %p550 = pneg %p248
        %p551 = pneg %p245
        %p552 = pneg %p269
        %p553 = pneg %p266
        %p554 = pneg %p290
        %p555 = pneg %p287
        %p556 = pneg %p318
        %p557 = pneg %p315
        %s558 = sand.u32 %s305, 1
        %s559 = scalar_lea.sflag [#allocation4], %s558
        %s560 = sand.u32 %s305, 1
        %s561 = smul.addr %s560, 8
        %s562 = scalar_lea.vmem [#allocation13], %s561
        %p563 = pneg %p346
        %p564 = pneg %p343
        %s565 = sand.u32 %s333, 1
        %s566 = sand.u32 %s333, 1
        %s567 = smul.addr %s566, 16
        %s568 = scalar_lea.vmem [#allocation14], %s567
        %v570 = vld [vmem:[%s484] sm:$0xff]
        %v571 = vpack.c.bf16 %v570, %v570
        %v572 = vld [vmem:[%s493] sm:$0xff]
        %v573 = vpack.c.bf16 %v572, %v572
        %v574 = vld [vmem:[%s502] sm:$0xff]
        %v575 = vpack.c.bf16 %v574, %v574
        %v576 = vld [vmem:[#allocation8] sm:$0xf]
        %v577 = vld [vmem:[#allocation8 + $0x4] sm:$0xf]
        %v578 = vld [vmem:[#allocation8 + $0x8] sm:$0xf]
        %v579 = vld [vmem:[#allocation8 + $0xc] sm:$0xf]
        %v580 = vld [vmem:[%s4] sm:$0x1]
        %v582 = vlaneseq
        %v583 = vshrl.u32 %v582, 7
        %v584 = vsub.s32 0, %v583
        %v585 = vrot.slane %v580, %v584
        %v591 = vunpack.c.l.b16 %v576
        %v592 = vunpack.c.l.b16 %v577
        %v593 = vunpack.c.l.b16 %v578
        %v594 = vunpack.c.l.b16 %v579
        %v595 = vpack.c.b16 %v592, %v591
        %v596 = vpack.c.b16 %v594, %v593
        %vm599 = vcmask 261120
        %v601 = vsel %vm599, %v571, 0
        %603 = vmatprep.subr.bf16.mxu0 0
        %604 = vmatpush1.bf16.msra.mxu0 %v595
        %605 = vmatprep.subr.bf16.mxu0 0
        %606 = vmatpush1.bf16.msra.mxu0 %v596
        %607 = vmatprep.subr.bf16.mxu0 0
        %608 = vmatpush1.bf16.msra.mxu0 0
        %609 = vmatprep.subr.bf16.mxu0 0
        %610 = vmatpush1.bf16.msra.mxu0 0
        %611 = vmatprep.subr.bf16.mxu0 0
        %612 = vmatpush1.bf16.msra.mxu0 0
        %613 = vmatprep.subr.bf16.mxu0 0
        %614 = vmatpush1.bf16.msra.mxu0 0
        %615 = vmatprep.subr.bf16.mxu0 0
        %616 = vmatpush1.bf16.msra.mxu0 0
        %617 = vmatprep.subr.bf16.mxu0 0
        %618 = vmatpush1.bf16.msra.mxu0 0
        %619 = vmatprep.subr.bf16.mxu0 0
        %620 = vmatpush1.bf16.msra.mxu0 0
        %621 = vmatprep.subr.bf16.mxu0 0
        %622 = vmatpush1.bf16.msra.mxu0 0
        %623 = vmatprep.subr.bf16.mxu0 0
        %624 = vmatpush1.bf16.msra.mxu0 0
        %625 = vmatprep.subr.bf16.mxu0 0
        %626 = vmatpush1.bf16.msra.mxu0 0
        %627 = vmatprep.subr.bf16.mxu0 0
        %628 = vmatpush1.bf16.msra.mxu0 0
        %629 = vmatprep.subr.bf16.mxu0 0
        %630 = vmatpush1.bf16.msra.mxu0 0
        %631 = vmatprep.subr.bf16.mxu0 0
        %632 = vmatpush1.bf16.msra.mxu0 0
        %633 = vmatprep.subr.bf16.mxu0 0
        %634 = vmatpush1.bf16.msra.mxu0 0
        %635 = vmatprep.mubr.bf16.mxu0 0
        %636 = vmatmul.mubr.bf16.gmra.mrb[0].mxu0 %v601
        %v637 = vpop.f32.mrb[0].mxu0
        %v638 = vadd.f32 %v585, %v637
        %v639 = vpop.f32.mrb[0].mxu0
        %v640 = vpop.f32.mrb[0].mxu0
        %v641 = vpop.f32.mrb[0].mxu0
        %642 = vdwg.mxu0
        %v643 = vld [vmem:[%s5] sm:$0xf]
        %v644 = vld [vmem:[%s5 + $0x4] sm:$0xf]
        %v645 = vld [vmem:[%s5 + $0x8] sm:$0xf]
        %v646 = vld [vmem:[%s5 + $0xc] sm:$0xf]
        %v647 = vld [vmem:[%s6] sm:$0x1]
        %v649 = vlaneseq
        %v650 = vshrl.u32 %v649, 7
        %v651 = vsub.s32 0, %v650
        %v652 = vrot.slane %v647, %v651
        %v658 = vunpack.c.l.b16 %v643
        %v659 = vunpack.c.l.b16 %v644
        %v660 = vunpack.c.l.b16 %v645
        %v661 = vunpack.c.l.b16 %v646
        %v662 = vpack.c.b16 %v659, %v658
        %v663 = vpack.c.b16 %v661, %v660
        %v667 = vsel %vm599, %v573, 0
        %669 = vmatprep.subr.bf16.mxu0 0
        %670 = vmatpush1.bf16.msra.mxu0 %v662
        %671 = vmatprep.subr.bf16.mxu0 0
        %672 = vmatpush1.bf16.msra.mxu0 %v663
        %673 = vmatprep.subr.bf16.mxu0 0
        %674 = vmatpush1.bf16.msra.mxu0 0
        %675 = vmatprep.subr.bf16.mxu0 0
        %676 = vmatpush1.bf16.msra.mxu0 0
        %677 = vmatprep.subr.bf16.mxu0 0
        %678 = vmatpush1.bf16.msra.mxu0 0
        %679 = vmatprep.subr.bf16.mxu0 0
        %680 = vmatpush1.bf16.msra.mxu0 0
        %681 = vmatprep.subr.bf16.mxu0 0
        %682 = vmatpush1.bf16.msra.mxu0 0
        %683 = vmatprep.subr.bf16.mxu0 0
        %684 = vmatpush1.bf16.msra.mxu0 0
        %685 = vmatprep.subr.bf16.mxu0 0
        %686 = vmatpush1.bf16.msra.mxu0 0
        %687 = vmatprep.subr.bf16.mxu0 0
        %688 = vmatpush1.bf16.msra.mxu0 0
        %689 = vmatprep.subr.bf16.mxu0 0
        %690 = vmatpush1.bf16.msra.mxu0 0
        %691 = vmatprep.subr.bf16.mxu0 0
        %692 = vmatpush1.bf16.msra.mxu0 0
        %693 = vmatprep.subr.bf16.mxu0 0
        %694 = vmatpush1.bf16.msra.mxu0 0
        %695 = vmatprep.subr.bf16.mxu0 0
        %696 = vmatpush1.bf16.msra.mxu0 0
        %697 = vmatprep.subr.bf16.mxu0 0
        %698 = vmatpush1.bf16.msra.mxu0 0
        %699 = vmatprep.subr.bf16.mxu0 0
        %700 = vmatpush1.bf16.msra.mxu0 0
        %701 = vmatprep.mubr.bf16.mxu0 0
        %702 = vmatmul.mubr.bf16.gmra.mrb[0].mxu0 %v667
        %v703 = vpop.f32.mrb[0].mxu0
        %v704 = vadd.f32 %v652, %v703
        %v705 = vpop.f32.mrb[0].mxu0
        %v706 = vpop.f32.mrb[0].mxu0
        %v707 = vpop.f32.mrb[0].mxu0
        %708 = vdwg.mxu0
        %v709 = vld [vmem:[#allocation10] sm:$0xf]
        %v710 = vld [vmem:[#allocation10 + $0x4] sm:$0xf]
        %v711 = vld [vmem:[#allocation10 + $0x8] sm:$0xf]
        %v712 = vld [vmem:[#allocation10 + $0xc] sm:$0xf]
        %v713 = vld [vmem:[#allocation11] sm:$0x1]
        %v715 = vlaneseq
        %v716 = vshrl.u32 %v715, 7
        %v717 = vsub.s32 0, %v716
        %v718 = vrot.slane %v713, %v717
        %v724 = vunpack.c.l.b16 %v709
        %v725 = vunpack.c.l.b16 %v710
        %v726 = vunpack.c.l.b16 %v711
        %v727 = vunpack.c.l.b16 %v712
        %v728 = vpack.c.b16 %v725, %v724
        %v729 = vpack.c.b16 %v727, %v726
        %v733 = vsel %vm599, %v575, 0
        %735 = vmatprep.subr.bf16.mxu0 0
        %736 = vmatpush1.bf16.msra.mxu0 %v728
        %737 = vmatprep.subr.bf16.mxu0 0
        %738 = vmatpush1.bf16.msra.mxu0 %v729
        %739 = vmatprep.subr.bf16.mxu0 0
        %740 = vmatpush1.bf16.msra.mxu0 0
        %741 = vmatprep.subr.bf16.mxu0 0
        %742 = vmatpush1.bf16.msra.mxu0 0
        %743 = vmatprep.subr.bf16.mxu0 0
        %744 = vmatpush1.bf16.msra.mxu0 0
        %745 = vmatprep.subr.bf16.mxu0 0
        %746 = vmatpush1.bf16.msra.mxu0 0
        %747 = vmatprep.subr.bf16.mxu0 0
        %748 = vmatpush1.bf16.msra.mxu0 0
        %749 = vmatprep.subr.bf16.mxu0 0
        %750 = vmatpush1.bf16.msra.mxu0 0
        %751 = vmatprep.subr.bf16.mxu0 0
        %752 = vmatpush1.bf16.msra.mxu0 0
        %753 = vmatprep.subr.bf16.mxu0 0
        %754 = vmatpush1.bf16.msra.mxu0 0
        %755 = vmatprep.subr.bf16.mxu0 0
        %756 = vmatpush1.bf16.msra.mxu0 0
        %757 = vmatprep.subr.bf16.mxu0 0
        %758 = vmatpush1.bf16.msra.mxu0 0
        %759 = vmatprep.subr.bf16.mxu0 0
        %760 = vmatpush1.bf16.msra.mxu0 0
        %761 = vmatprep.subr.bf16.mxu0 0
        %762 = vmatpush1.bf16.msra.mxu0 0
        %763 = vmatprep.subr.bf16.mxu0 0
        %764 = vmatpush1.bf16.msra.mxu0 0
        %765 = vmatprep.subr.bf16.mxu0 0
        %766 = vmatpush1.bf16.msra.mxu0 0
        %767 = vmatprep.mubr.bf16.mxu0 0
        %768 = vmatmul.mubr.bf16.gmra.mrb[0].mxu0 %v733
        %v769 = vpop.f32.mrb[0].mxu0
        %v770 = vadd.f32 %v718, %v769
        %v771 = vpop.f32.mrb[0].mxu0
        %v772 = vpop.f32.mrb[0].mxu0
        %v773 = vpop.f32.mrb[0].mxu0
        %774 = vdwg.mxu0
        %v775 = vmul.f32 %v638, 0.35355338
        %777 = vrot.lane.b32.xlu0 %v775, 120
        %v778 = vpop.permute.xlu0 %777
        %780 = vrot.lane.b32.xlu0 %v775, 112
        %v781 = vpop.permute.xlu0 %780
        %783 = vrot.lane.b32.xlu0 %v775, 104
        %v784 = vpop.permute.xlu0 %783
        %v786 = vcombine.low %v775, %v781
        %v787 = vcombine.high %v775, %v781
        %v789 = vunpack.c.l.s4 1983009808
        %v790 = vunpack.c.0.s8 %v789
        %v791 = vlaneseq
        %v792 = vshrl.u32 %v791, 7
        %v793 = vsub.s32 %v790, %v792
        %v794 = vrot.slane %v786, %v793
        %v796 = vunpack.c.l.s4 1983009808
        %v797 = vunpack.c.0.s8 %v796
        %v798 = vlaneseq
        %v799 = vshrl.u32 %v798, 7
        %v800 = vsub.s32 %v797, %v799
        %v801 = vrot.slane %v787, %v800
        %v802 = vcombine.low %v778, %v784
        %v803 = vcombine.high %v778, %v784
        %v805 = vunpack.c.l.s4 1983009808
        %v806 = vunpack.c.0.s8 %v805
        %v807 = vlaneseq
        %v808 = vshrl.u32 %v807, 7
        %v809 = vsub.s32 %v806, %v808
        %v810 = vrot.slane %v802, %v809
        %v812 = vunpack.c.l.s4 1983009808
        %v813 = vunpack.c.0.s8 %v812
        %v814 = vlaneseq
        %v815 = vshrl.u32 %v814, 7
        %v816 = vsub.s32 %v813, %v815
        %v817 = vrot.slane %v803, %v816
        %v818 = vcombine.low %v794, %v810
        %v819 = vcombine.high %v794, %v810
        %v821 = vunpack.c.l.s4 1934713408
        %v822 = vunpack.c.0.s8 %v821
        %v823 = vlaneseq
        %v824 = vshrl.u32 %v823, 7
        %v825 = vsub.s32 %v822, %v824
        %v826 = vrot.slane %v818, %v825
        %v828 = vunpack.c.l.s4 1934713408
        %v829 = vunpack.c.0.s8 %v828
        %v830 = vlaneseq
        %v831 = vshrl.u32 %v830, 7
        %v832 = vsub.s32 %v829, %v831
        %v833 = vrot.slane %v819, %v832
        %v834 = vcombine.low %v801, %v817
        %v835 = vcombine.high %v801, %v817
        %v837 = vunpack.c.l.s4 1934713408
        %v838 = vunpack.c.0.s8 %v837
        %v839 = vlaneseq
        %v840 = vshrl.u32 %v839, 7
        %v841 = vsub.s32 %v838, %v840
        %v842 = vrot.slane %v834, %v841
        %v844 = vunpack.c.l.s4 1934713408
        %v845 = vunpack.c.0.s8 %v844
        %v846 = vlaneseq
        %v847 = vshrl.u32 %v846, 7
        %v848 = vsub.s32 %v845, %v847
        %v849 = vrot.slane %v835, %v848
        %v850 = vcombine.high %v826, 0.0
        %v851 = vcombine.high %v833, 0.0
        %v852 = vcombine.high %v842, 0.0
        %v853 = vcombine.high %v849, 0.0
        %v854 = vpack.c.bf16 %v826, %v826
        %v855 = vpack.c.bf16 %v850, %v850
        %v856 = vpack.c.bf16 %v833, %v833
        %v857 = vpack.c.bf16 %v851, %v851
        %v858 = vpack.c.bf16 %v842, %v842
        %v859 = vpack.c.bf16 %v852, %v852
        %v860 = vpack.c.bf16 %v849, %v849
        %v861 = vpack.c.bf16 %v853, %v853
        %863 = vrot.lane.b32.xlu0 %v704, 120
        %v864 = vpop.permute.xlu0 %863
        %866 = vrot.lane.b32.xlu0 %v704, 112
        %v867 = vpop.permute.xlu0 %866
        %869 = vrot.lane.b32.xlu0 %v704, 104
        %v870 = vpop.permute.xlu0 %869
        %v872 = vcombine.low %v704, %v867
        %v873 = vcombine.high %v704, %v867
        %v875 = vunpack.c.l.s4 1983009808
        %v876 = vunpack.c.0.s8 %v875
        %v877 = vlaneseq
        %v878 = vshrl.u32 %v877, 7
        %v879 = vsub.s32 %v876, %v878
        %v880 = vrot.slane %v872, %v879
        %v882 = vunpack.c.l.s4 1983009808
        %v883 = vunpack.c.0.s8 %v882
        %v884 = vlaneseq
        %v885 = vshrl.u32 %v884, 7
        %v886 = vsub.s32 %v883, %v885
        %v887 = vrot.slane %v873, %v886
        %v888 = vcombine.low %v864, %v870
        %v889 = vcombine.high %v864, %v870
        %v891 = vunpack.c.l.s4 1983009808
        %v892 = vunpack.c.0.s8 %v891
        %v893 = vlaneseq
        %v894 = vshrl.u32 %v893, 7
        %v895 = vsub.s32 %v892, %v894
        %v896 = vrot.slane %v888, %v895
        %v898 = vunpack.c.l.s4 1983009808
        %v899 = vunpack.c.0.s8 %v898
        %v900 = vlaneseq
        %v901 = vshrl.u32 %v900, 7
        %v902 = vsub.s32 %v899, %v901
        %v903 = vrot.slane %v889, %v902
        %v904 = vcombine.low %v880, %v896
        %v905 = vcombine.high %v880, %v896
        %v907 = vunpack.c.l.s4 1934713408
        %v908 = vunpack.c.0.s8 %v907
        %v909 = vlaneseq
        %v910 = vshrl.u32 %v909, 7
        %v911 = vsub.s32 %v908, %v910
        %v912 = vrot.slane %v904, %v911
        %v914 = vunpack.c.l.s4 1934713408
        %v915 = vunpack.c.0.s8 %v914
        %v916 = vlaneseq
        %v917 = vshrl.u32 %v916, 7
        %v918 = vsub.s32 %v915, %v917
        %v919 = vrot.slane %v905, %v918
        %v920 = vcombine.low %v887, %v903
        %v921 = vcombine.high %v887, %v903
        %v923 = vunpack.c.l.s4 1934713408
        %v924 = vunpack.c.0.s8 %v923
        %v925 = vlaneseq
        %v926 = vshrl.u32 %v925, 7
        %v927 = vsub.s32 %v924, %v926
        %v928 = vrot.slane %v920, %v927
        %v930 = vunpack.c.l.s4 1934713408
        %v931 = vunpack.c.0.s8 %v930
        %v932 = vlaneseq
        %v933 = vshrl.u32 %v932, 7
        %v934 = vsub.s32 %v931, %v933
        %v935 = vrot.slane %v921, %v934
        %v936 = vcombine.high %v912, 0.0
        %v937 = vcombine.high %v919, 0.0
        %v938 = vcombine.high %v928, 0.0
        %v939 = vcombine.high %v935, 0.0
        %v940 = vpack.c.bf16 %v912, %v912
        %v941 = vpack.c.bf16 %v936, %v936
        %v942 = vpack.c.bf16 %v919, %v919
        %v943 = vpack.c.bf16 %v937, %v937
        %v944 = vpack.c.bf16 %v928, %v928
        %v945 = vpack.c.bf16 %v938, %v938
        %v946 = vpack.c.bf16 %v935, %v935
        %v947 = vpack.c.bf16 %v939, %v939
        %949 = vrot.lane.b32.xlu0 %v770, 120
        %v950 = vpop.permute.xlu0 %949
        %952 = vrot.lane.b32.xlu0 %v770, 112
        %v953 = vpop.permute.xlu0 %952
        %955 = vrot.lane.b32.xlu0 %v770, 104
        %v956 = vpop.permute.xlu0 %955
        %v958 = vcombine.low %v770, %v953
        %v959 = vcombine.high %v770, %v953
        %v961 = vunpack.c.l.s4 1983009808
        %v962 = vunpack.c.0.s8 %v961
        %v963 = vlaneseq
        %v964 = vshrl.u32 %v963, 7
        %v965 = vsub.s32 %v962, %v964
        %v966 = vrot.slane %v958, %v965
        %v968 = vunpack.c.l.s4 1983009808
        %v969 = vunpack.c.0.s8 %v968
        %v970 = vlaneseq
        %v971 = vshrl.u32 %v970, 7
        %v972 = vsub.s32 %v969, %v971
        %v973 = vrot.slane %v959, %v972
        %v974 = vcombine.low %v950, %v956
        %v975 = vcombine.high %v950, %v956
        %v977 = vunpack.c.l.s4 1983009808
        %v978 = vunpack.c.0.s8 %v977
        %v979 = vlaneseq
        %v980 = vshrl.u32 %v979, 7
        %v981 = vsub.s32 %v978, %v980
        %v982 = vrot.slane %v974, %v981
        %v984 = vunpack.c.l.s4 1983009808
        %v985 = vunpack.c.0.s8 %v984
        %v986 = vlaneseq
        %v987 = vshrl.u32 %v986, 7
        %v988 = vsub.s32 %v985, %v987
        %v989 = vrot.slane %v975, %v988
        %v990 = vcombine.low %v966, %v982
        %v991 = vcombine.high %v966, %v982
        %v993 = vunpack.c.l.s4 1934713408
        %v994 = vunpack.c.0.s8 %v993
        %v995 = vlaneseq
        %v996 = vshrl.u32 %v995, 7
        %v997 = vsub.s32 %v994, %v996
        %v998 = vrot.slane %v990, %v997
        %v1000 = vunpack.c.l.s4 1934713408
        %v1001 = vunpack.c.0.s8 %v1000
        %v1002 = vlaneseq
        %v1003 = vshrl.u32 %v1002, 7
        %v1004 = vsub.s32 %v1001, %v1003
        %v1005 = vrot.slane %v991, %v1004
        %v1006 = vcombine.low %v973, %v989
        %v1007 = vcombine.high %v973, %v989
        %v1009 = vunpack.c.l.s4 1934713408
        %v1010 = vunpack.c.0.s8 %v1009
        %v1011 = vlaneseq
        %v1012 = vshrl.u32 %v1011, 7
        %v1013 = vsub.s32 %v1010, %v1012
        %v1014 = vrot.slane %v1006, %v1013
        %v1016 = vunpack.c.l.s4 1934713408
        %v1017 = vunpack.c.0.s8 %v1016
        %v1018 = vlaneseq
        %v1019 = vshrl.u32 %v1018, 7
        %v1020 = vsub.s32 %v1017, %v1019
        %v1021 = vrot.slane %v1007, %v1020
        %v1022 = vcombine.high %v998, 0.0
        %v1023 = vcombine.high %v1005, 0.0
        %v1024 = vcombine.high %v1014, 0.0
        %v1025 = vcombine.high %v1021, 0.0
        %v1026 = vpack.c.bf16 %v998, %v998
        %v1027 = vpack.c.bf16 %v1022, %v1022
        %v1028 = vpack.c.bf16 %v1005, %v1005
        %v1029 = vpack.c.bf16 %v1023, %v1023
        %v1030 = vpack.c.bf16 %v1014, %v1014
        %v1031 = vpack.c.bf16 %v1024, %v1024
        %v1032 = vpack.c.bf16 %v1021, %v1021
        %v1033 = vpack.c.bf16 %v1025, %v1025
        %v1034 = vcombine.low %v854, %v858
        %v1036 = vunpack.c.l.s4 1983009808
        %v1037 = vunpack.c.0.s8 %v1036
        %v1038 = vlaneseq
        %v1039 = vshrl.u32 %v1038, 7
        %v1040 = vsub.s32 %v1037, %v1039
        %v1041 = vrot.slane %v1034, %v1040
        %v1042 = vcombine.low %v856, %v860
        %v1044 = vunpack.c.l.s4 1983009808
        %v1045 = vunpack.c.0.s8 %v1044
        %v1046 = vlaneseq
        %v1047 = vshrl.u32 %v1046, 7
        %v1048 = vsub.s32 %v1045, %v1047
        %v1049 = vrot.slane %v1042, %v1048
        %v1050 = vcombine.low %v1041, %v1049
        %v1052 = vunpack.c.l.s4 1934713408
        %v1053 = vunpack.c.0.s8 %v1052
        %v1054 = vlaneseq
        %v1055 = vshrl.u32 %v1054, 7
        %v1056 = vsub.s32 %v1053, %v1055
        %v1057 = vrot.slane %v1050, %v1056
        %v1058 = vcombine.high %v1057, 0
        %v1059 = vcombine.low %v855, %v859
        %v1061 = vunpack.c.l.s4 1983009808
        %v1062 = vunpack.c.0.s8 %v1061
        %v1063 = vlaneseq
        %v1064 = vshrl.u32 %v1063, 7
        %v1065 = vsub.s32 %v1062, %v1064
        %v1066 = vrot.slane %v1059, %v1065
        %v1067 = vcombine.low %v857, %v861
        %v1069 = vunpack.c.l.s4 1983009808
        %v1070 = vunpack.c.0.s8 %v1069
        %v1071 = vlaneseq
        %v1072 = vshrl.u32 %v1071, 7
        %v1073 = vsub.s32 %v1070, %v1072
        %v1074 = vrot.slane %v1067, %v1073
        %v1075 = vcombine.low %v1066, %v1074
        %v1077 = vunpack.c.l.s4 1934713408
        %v1078 = vunpack.c.0.s8 %v1077
        %v1079 = vlaneseq
        %v1080 = vshrl.u32 %v1079, 7
        %v1081 = vsub.s32 %v1078, %v1080
        %v1082 = vrot.slane %v1075, %v1081
        %v1083 = vcombine.high %v1082, 0
        %v1086 = vpack.i.b16 %v1082, %v1057
        %v1087 = vshrl.u32 %v1057, 16
        %v1088 = vshrl.u32 %v1082, 16
        %v1089 = vpack.i.b16 %v1088, %v1087
        %v1092 = vpack.i.b16 %v1083, %v1058
        %v1093 = vshrl.u32 %v1058, 16
        %v1094 = vshrl.u32 %v1083, 16
        %v1095 = vpack.i.b16 %v1094, %v1093
        %1096 = vxpose.xlu0.c.b16.start [1/8] %v940, 128
        %1097 = vxpose.xlu0.c.b16.cont [2/8] 0, 128
        %1098 = vxpose.xlu0.c.b16.cont [3/8] 0, 128
        %1099 = vxpose.xlu0.c.b16.cont [4/8] 0, 128
        %1100 = vxpose.xlu0.c.b16.cont [5/8] 0, 128
        %1101 = vxpose.xlu0.c.b16.cont [6/8] 0, 128
        %1102 = vxpose.xlu0.c.b16.cont [7/8] 0, 128
        %1103 = vxpose.xlu0.c.b16.end [8/8] 0, 128
        %v1104 = vpop.trf.xlu0
        %v1105 = vpop.trf.xlu0
        %v1106 = vpop.trf.xlu0
        %v1107 = vpop.trf.xlu0
        %v1108 = vpop.trf.xlu0
        %v1109 = vpop.trf.xlu0
        %v1110 = vpop.trf.xlu0
        %v1111 = vpop.trf.xlu0
        %1112 = vxpose.xlu0.c.b16.start [1/8] %v941, 128
        %1113 = vxpose.xlu0.c.b16.cont [2/8] 0, 128
        %1114 = vxpose.xlu0.c.b16.cont [3/8] 0, 128
        %1115 = vxpose.xlu0.c.b16.cont [4/8] 0, 128
        %1116 = vxpose.xlu0.c.b16.cont [5/8] 0, 128
        %1117 = vxpose.xlu0.c.b16.cont [6/8] 0, 128
        %1118 = vxpose.xlu0.c.b16.cont [7/8] 0, 128
        %1119 = vxpose.xlu0.c.b16.end [8/8] 0, 128
        %v1120 = vpop.trf.xlu0
        %v1121 = vpop.trf.xlu0
        %v1122 = vpop.trf.xlu0
        %v1123 = vpop.trf.xlu0
        %v1124 = vpop.trf.xlu0
        %v1125 = vpop.trf.xlu0
        %v1126 = vpop.trf.xlu0
        %v1127 = vpop.trf.xlu0
        %1128 = vxpose.xlu0.c.b16.start [1/8] %v942, 128
        %1129 = vxpose.xlu0.c.b16.cont [2/8] 0, 128
        %1130 = vxpose.xlu0.c.b16.cont [3/8] 0, 128
        %1131 = vxpose.xlu0.c.b16.cont [4/8] 0, 128
        %1132 = vxpose.xlu0.c.b16.cont [5/8] 0, 128
        %1133 = vxpose.xlu0.c.b16.cont [6/8] 0, 128
        %1134 = vxpose.xlu0.c.b16.cont [7/8] 0, 128
        %1135 = vxpose.xlu0.c.b16.end [8/8] 0, 128
        %v1136 = vpop.trf.xlu0
        %v1137 = vpop.trf.xlu0
        %v1138 = vpop.trf.xlu0
        %v1139 = vpop.trf.xlu0
        %v1140 = vpop.trf.xlu0
        %v1141 = vpop.trf.xlu0
        %v1142 = vpop.trf.xlu0
        %v1143 = vpop.trf.xlu0
        %1144 = vxpose.xlu0.c.b16.start [1/8] %v943, 128
        %1145 = vxpose.xlu0.c.b16.cont [2/8] 0, 128
        %1146 = vxpose.xlu0.c.b16.cont [3/8] 0, 128
        %1147 = vxpose.xlu0.c.b16.cont [4/8] 0, 128
        %1148 = vxpose.xlu0.c.b16.cont [5/8] 0, 128
        %1149 = vxpose.xlu0.c.b16.cont [6/8] 0, 128
        %1150 = vxpose.xlu0.c.b16.cont [7/8] 0, 128
        %1151 = vxpose.xlu0.c.b16.end [8/8] 0, 128
        %v1152 = vpop.trf.xlu0
        %v1153 = vpop.trf.xlu0
        %v1154 = vpop.trf.xlu0
        %v1155 = vpop.trf.xlu0
        %v1156 = vpop.trf.xlu0
        %v1157 = vpop.trf.xlu0
        %v1158 = vpop.trf.xlu0
        %v1159 = vpop.trf.xlu0
        %1160 = vxpose.xlu0.c.b16.start [1/8] %v944, 128
        %1161 = vxpose.xlu0.c.b16.cont [2/8] 0, 128
        %1162 = vxpose.xlu0.c.b16.cont [3/8] 0, 128
        %1163 = vxpose.xlu0.c.b16.cont [4/8] 0, 128
        %1164 = vxpose.xlu0.c.b16.cont [5/8] 0, 128
        %1165 = vxpose.xlu0.c.b16.cont [6/8] 0, 128
        %1166 = vxpose.xlu0.c.b16.cont [7/8] 0, 128
        %1167 = vxpose.xlu0.c.b16.end [8/8] 0, 128
        %v1168 = vpop.trf.xlu0
        %v1169 = vpop.trf.xlu0
        %v1170 = vpop.trf.xlu0
        %v1171 = vpop.trf.xlu0
        %v1172 = vpop.trf.xlu0
        %v1173 = vpop.trf.xlu0
        %v1174 = vpop.trf.xlu0
        %v1175 = vpop.trf.xlu0
        %1176 = vxpose.xlu0.c.b16.start [1/8] %v945, 128
        %1177 = vxpose.xlu0.c.b16.cont [2/8] 0, 128
        %1178 = vxpose.xlu0.c.b16.cont [3/8] 0, 128
        %1179 = vxpose.xlu0.c.b16.cont [4/8] 0, 128
        %1180 = vxpose.xlu0.c.b16.cont [5/8] 0, 128
        %1181 = vxpose.xlu0.c.b16.cont [6/8] 0, 128
        %1182 = vxpose.xlu0.c.b16.cont [7/8] 0, 128
        %1183 = vxpose.xlu0.c.b16.end [8/8] 0, 128
        %v1184 = vpop.trf.xlu0
        %v1185 = vpop.trf.xlu0
        %v1186 = vpop.trf.xlu0
        %v1187 = vpop.trf.xlu0
        %v1188 = vpop.trf.xlu0
        %v1189 = vpop.trf.xlu0
        %v1190 = vpop.trf.xlu0
        %v1191 = vpop.trf.xlu0
        %1192 = vxpose.xlu0.c.b16.start [1/8] %v946, 128
        %1193 = vxpose.xlu0.c.b16.cont [2/8] 0, 128
        %1194 = vxpose.xlu0.c.b16.cont [3/8] 0, 128
        %1195 = vxpose.xlu0.c.b16.cont [4/8] 0, 128
        %1196 = vxpose.xlu0.c.b16.cont [5/8] 0, 128
        %1197 = vxpose.xlu0.c.b16.cont [6/8] 0, 128
        %1198 = vxpose.xlu0.c.b16.cont [7/8] 0, 128
        %1199 = vxpose.xlu0.c.b16.end [8/8] 0, 128
        %v1200 = vpop.trf.xlu0
        %v1201 = vpop.trf.xlu0
        %v1202 = vpop.trf.xlu0
        %v1203 = vpop.trf.xlu0
        %v1204 = vpop.trf.xlu0
        %v1205 = vpop.trf.xlu0
        %v1206 = vpop.trf.xlu0
        %v1207 = vpop.trf.xlu0
        %1208 = vxpose.xlu0.c.b16.start [1/8] %v947, 128
        %1209 = vxpose.xlu0.c.b16.cont [2/8] 0, 128
        %1210 = vxpose.xlu0.c.b16.cont [3/8] 0, 128
        %1211 = vxpose.xlu0.c.b16.cont [4/8] 0, 128
        %1212 = vxpose.xlu0.c.b16.cont [5/8] 0, 128
        %1213 = vxpose.xlu0.c.b16.cont [6/8] 0, 128
        %1214 = vxpose.xlu0.c.b16.cont [7/8] 0, 128
        %1215 = vxpose.xlu0.c.b16.end [8/8] 0, 128
        %v1216 = vpop.trf.xlu0
        %v1217 = vpop.trf.xlu0
        %v1218 = vpop.trf.xlu0
        %v1219 = vpop.trf.xlu0
        %v1220 = vpop.trf.xlu0
        %v1221 = vpop.trf.xlu0
        %v1222 = vpop.trf.xlu0
        %v1223 = vpop.trf.xlu0
        %v1224 = vcombine.low %v1104, %v1168
        %v1226 = vunpack.c.l.s4 1983009808
        %v1227 = vunpack.c.0.s8 %v1226
        %v1228 = vlaneseq
        %v1229 = vshrl.u32 %v1228, 7
        %v1230 = vsub.s32 %v1227, %v1229
        %v1231 = vrot.slane %v1224, %v1230
        %v1232 = vcombine.low %v1136, %v1200
        %v1234 = vunpack.c.l.s4 1983009808
        %v1235 = vunpack.c.0.s8 %v1234
        %v1236 = vlaneseq
        %v1237 = vshrl.u32 %v1236, 7
        %v1238 = vsub.s32 %v1235, %v1237
        %v1239 = vrot.slane %v1232, %v1238
        %v1240 = vcombine.low %v1231, %v1239
        %v1241 = vcombine.high %v1231, %v1239
        %v1243 = vunpack.c.l.s4 1934713408
        %v1244 = vunpack.c.0.s8 %v1243
        %v1245 = vlaneseq
        %v1246 = vshrl.u32 %v1245, 7
        %v1247 = vsub.s32 %v1244, %v1246
        %v1248 = vrot.slane %v1240, %v1247
        %v1250 = vunpack.c.l.s4 1934713408
        %v1251 = vunpack.c.0.s8 %v1250
        %v1252 = vlaneseq
        %v1253 = vshrl.u32 %v1252, 7
        %v1254 = vsub.s32 %v1251, %v1253
        %v1255 = vrot.slane %v1241, %v1254
        %v1256 = vcombine.high %v1248, 0
        %v1257 = vcombine.high %v1255, 0
        %v1258 = vcombine.low %v1120, %v1184
        %v1260 = vunpack.c.l.s4 1983009808
        %v1261 = vunpack.c.0.s8 %v1260
        %v1262 = vlaneseq
        %v1263 = vshrl.u32 %v1262, 7
        %v1264 = vsub.s32 %v1261, %v1263
        %v1265 = vrot.slane %v1258, %v1264
        %v1266 = vcombine.low %v1152, %v1216
        %v1268 = vunpack.c.l.s4 1983009808
        %v1269 = vunpack.c.0.s8 %v1268
        %v1270 = vlaneseq
        %v1271 = vshrl.u32 %v1270, 7
        %v1272 = vsub.s32 %v1269, %v1271
        %v1273 = vrot.slane %v1266, %v1272
        %v1274 = vcombine.low %v1265, %v1273
        %v1275 = vcombine.high %v1265, %v1273
        %v1277 = vunpack.c.l.s4 1934713408
        %v1278 = vunpack.c.0.s8 %v1277
        %v1279 = vlaneseq
        %v1280 = vshrl.u32 %v1279, 7
        %v1281 = vsub.s32 %v1278, %v1280
        %v1282 = vrot.slane %v1274, %v1281
        %v1284 = vunpack.c.l.s4 1934713408
        %v1285 = vunpack.c.0.s8 %v1284
        %v1286 = vlaneseq
        %v1287 = vshrl.u32 %v1286, 7
        %v1288 = vsub.s32 %v1285, %v1287
        %v1289 = vrot.slane %v1275, %v1288
        %v1290 = vcombine.high %v1282, 0
        %v1291 = vcombine.high %v1289, 0
        %v1294 = vpack.i.b16 %v1282, %v1248
        %v1296 = vshrl.u32 %v1248, 16
        %v1297 = vshrl.u32 %v1282, 16
        %v1298 = vpack.i.b16 %v1297, %v1296
        %v1302 = vpack.i.b16 %v1290, %v1256
        %v1304 = vshrl.u32 %v1256, 16
        %v1305 = vshrl.u32 %v1290, 16
        %v1306 = vpack.i.b16 %v1305, %v1304
        %v1310 = vpack.i.b16 %v1289, %v1255
        %v1312 = vshrl.u32 %v1255, 16
        %v1313 = vshrl.u32 %v1289, 16
        %v1314 = vpack.i.b16 %v1313, %v1312
        %v1318 = vpack.i.b16 %v1291, %v1257
        %v1320 = vshrl.u32 %v1257, 16
        %v1321 = vshrl.u32 %v1291, 16
        %v1322 = vpack.i.b16 %v1321, %v1320
        %1324 = vxpose.xlu0.c.b16.start [1/8] %v1294, 128
        %1325 = vxpose.xlu0.c.b16.cont [2/8] 0, 128
        %1326 = vxpose.xlu0.c.b16.cont [3/8] 0, 128
        %1327 = vxpose.xlu0.c.b16.cont [4/8] 0, 128
        %1328 = vxpose.xlu0.c.b16.cont [5/8] 0, 128
        %1329 = vxpose.xlu0.c.b16.cont [6/8] 0, 128
        %1330 = vxpose.xlu0.c.b16.cont [7/8] 0, 128
        %1331 = vxpose.xlu0.c.b16.end [8/8] 0, 128
        %v1332 = vpop.trf.xlu0
        %v1333 = vpop.trf.xlu0
        %v1334 = vpop.trf.xlu0
        %v1335 = vpop.trf.xlu0
        %v1336 = vpop.trf.xlu0
        %v1337 = vpop.trf.xlu0
        %v1338 = vpop.trf.xlu0
        %v1339 = vpop.trf.xlu0
        %1340 = vxpose.xlu0.c.b16.start [1/8] %v1298, 128
        %1341 = vxpose.xlu0.c.b16.cont [2/8] 0, 128
        %1342 = vxpose.xlu0.c.b16.cont [3/8] 0, 128
        %1343 = vxpose.xlu0.c.b16.cont [4/8] 0, 128
        %1344 = vxpose.xlu0.c.b16.cont [5/8] 0, 128
        %1345 = vxpose.xlu0.c.b16.cont [6/8] 0, 128
        %1346 = vxpose.xlu0.c.b16.cont [7/8] 0, 128
        %1347 = vxpose.xlu0.c.b16.end [8/8] 0, 128
        %v1348 = vpop.trf.xlu0
        %v1349 = vpop.trf.xlu0
        %v1350 = vpop.trf.xlu0
        %v1351 = vpop.trf.xlu0
        %v1352 = vpop.trf.xlu0
        %v1353 = vpop.trf.xlu0
        %v1354 = vpop.trf.xlu0
        %v1355 = vpop.trf.xlu0
        %1356 = vxpose.xlu0.c.b16.start [1/8] %v1302, 128
        %1357 = vxpose.xlu0.c.b16.cont [2/8] 0, 128
        %1358 = vxpose.xlu0.c.b16.cont [3/8] 0, 128
        %1359 = vxpose.xlu0.c.b16.cont [4/8] 0, 128
        %1360 = vxpose.xlu0.c.b16.cont [5/8] 0, 128
        %1361 = vxpose.xlu0.c.b16.cont [6/8] 0, 128
        %1362 = vxpose.xlu0.c.b16.cont [7/8] 0, 128
        %1363 = vxpose.xlu0.c.b16.end [8/8] 0, 128
        %v1364 = vpop.trf.xlu0
        %v1365 = vpop.trf.xlu0
        %v1366 = vpop.trf.xlu0
        %v1367 = vpop.trf.xlu0
        %v1368 = vpop.trf.xlu0
        %v1369 = vpop.trf.xlu0
        %v1370 = vpop.trf.xlu0
        %v1371 = vpop.trf.xlu0
        %1372 = vxpose.xlu0.c.b16.start [1/8] %v1306, 128
        %1373 = vxpose.xlu0.c.b16.cont [2/8] 0, 128
        %1374 = vxpose.xlu0.c.b16.cont [3/8] 0, 128
        %1375 = vxpose.xlu0.c.b16.cont [4/8] 0, 128
        %1376 = vxpose.xlu0.c.b16.cont [5/8] 0, 128
        %1377 = vxpose.xlu0.c.b16.cont [6/8] 0, 128
        %1378 = vxpose.xlu0.c.b16.cont [7/8] 0, 128
        %1379 = vxpose.xlu0.c.b16.end [8/8] 0, 128
        %v1380 = vpop.trf.xlu0
        %v1381 = vpop.trf.xlu0
        %v1382 = vpop.trf.xlu0
        %v1383 = vpop.trf.xlu0
        %v1384 = vpop.trf.xlu0
        %v1385 = vpop.trf.xlu0
        %v1386 = vpop.trf.xlu0
        %v1387 = vpop.trf.xlu0
        %1388 = vxpose.xlu0.c.b16.start [1/8] %v1310, 128
        %1389 = vxpose.xlu0.c.b16.cont [2/8] 0, 128
        %1390 = vxpose.xlu0.c.b16.cont [3/8] 0, 128
        %1391 = vxpose.xlu0.c.b16.cont [4/8] 0, 128
        %1392 = vxpose.xlu0.c.b16.cont [5/8] 0, 128
        %1393 = vxpose.xlu0.c.b16.cont [6/8] 0, 128
        %1394 = vxpose.xlu0.c.b16.cont [7/8] 0, 128
        %1395 = vxpose.xlu0.c.b16.end [8/8] 0, 128
        %v1396 = vpop.trf.xlu0
        %v1397 = vpop.trf.xlu0
        %v1398 = vpop.trf.xlu0
        %v1399 = vpop.trf.xlu0
        %v1400 = vpop.trf.xlu0
        %v1401 = vpop.trf.xlu0
        %v1402 = vpop.trf.xlu0
        %v1403 = vpop.trf.xlu0
        %1404 = vxpose.xlu0.c.b16.start [1/8] %v1314, 128
        %1405 = vxpose.xlu0.c.b16.cont [2/8] 0, 128
        %1406 = vxpose.xlu0.c.b16.cont [3/8] 0, 128
        %1407 = vxpose.xlu0.c.b16.cont [4/8] 0, 128
        %1408 = vxpose.xlu0.c.b16.cont [5/8] 0, 128
        %1409 = vxpose.xlu0.c.b16.cont [6/8] 0, 128
        %1410 = vxpose.xlu0.c.b16.cont [7/8] 0, 128
        %1411 = vxpose.xlu0.c.b16.end [8/8] 0, 128
        %v1412 = vpop.trf.xlu0
        %v1413 = vpop.trf.xlu0
        %v1414 = vpop.trf.xlu0
        %v1415 = vpop.trf.xlu0
        %v1416 = vpop.trf.xlu0
        %v1417 = vpop.trf.xlu0
        %v1418 = vpop.trf.xlu0
        %v1419 = vpop.trf.xlu0
        %1420 = vxpose.xlu0.c.b16.start [1/8] %v1318, 128
        %1421 = vxpose.xlu0.c.b16.cont [2/8] 0, 128
        %1422 = vxpose.xlu0.c.b16.cont [3/8] 0, 128
        %1423 = vxpose.xlu0.c.b16.cont [4/8] 0, 128
        %1424 = vxpose.xlu0.c.b16.cont [5/8] 0, 128
        %1425 = vxpose.xlu0.c.b16.cont [6/8] 0, 128
        %1426 = vxpose.xlu0.c.b16.cont [7/8] 0, 128
        %1427 = vxpose.xlu0.c.b16.end [8/8] 0, 128
        %v1428 = vpop.trf.xlu0
        %v1429 = vpop.trf.xlu0
        %v1430 = vpop.trf.xlu0
        %v1431 = vpop.trf.xlu0
        %v1432 = vpop.trf.xlu0
        %v1433 = vpop.trf.xlu0
        %v1434 = vpop.trf.xlu0
        %v1435 = vpop.trf.xlu0
        %1436 = vxpose.xlu0.c.b16.start [1/8] %v1322, 128
        %1437 = vxpose.xlu0.c.b16.cont [2/8] 0, 128
        %1438 = vxpose.xlu0.c.b16.cont [3/8] 0, 128
        %1439 = vxpose.xlu0.c.b16.cont [4/8] 0, 128
        %1440 = vxpose.xlu0.c.b16.cont [5/8] 0, 128
        %1441 = vxpose.xlu0.c.b16.cont [6/8] 0, 128
        %1442 = vxpose.xlu0.c.b16.cont [7/8] 0, 128
        %1443 = vxpose.xlu0.c.b16.end [8/8] 0, 128
        %v1444 = vpop.trf.xlu0
        %v1445 = vpop.trf.xlu0
        %v1446 = vpop.trf.xlu0
        %v1447 = vpop.trf.xlu0
        %v1448 = vpop.trf.xlu0
        %v1449 = vpop.trf.xlu0
        %v1450 = vpop.trf.xlu0
        %v1451 = vpop.trf.xlu0
        %v1452 = vcombine.low %v1332, %v1396
        %v1454 = vunpack.c.l.s4 1983009808
        %v1455 = vunpack.c.0.s8 %v1454
        %v1456 = vlaneseq
        %v1457 = vshrl.u32 %v1456, 7
        %v1458 = vsub.s32 %v1455, %v1457
        %v1459 = vrot.slane %v1452, %v1458
        %v1460 = vcombine.low %v1364, %v1428
        %v1462 = vunpack.c.l.s4 1983009808
        %v1463 = vunpack.c.0.s8 %v1462
        %v1464 = vlaneseq
        %v1465 = vshrl.u32 %v1464, 7
        %v1466 = vsub.s32 %v1463, %v1465
        %v1467 = vrot.slane %v1460, %v1466
        %v1468 = vcombine.low %v1459, %v1467
        %v1470 = vunpack.c.l.s4 1934713408
        %v1471 = vunpack.c.0.s8 %v1470
        %v1472 = vlaneseq
        %v1473 = vshrl.u32 %v1472, 7
        %v1474 = vsub.s32 %v1471, %v1473
        %v1475 = vrot.slane %v1468, %v1474
        %v1476 = vcombine.high %v1475, 0
        %v1477 = vcombine.low %v1348, %v1412
        %v1479 = vunpack.c.l.s4 1983009808
        %v1480 = vunpack.c.0.s8 %v1479
        %v1481 = vlaneseq
        %v1482 = vshrl.u32 %v1481, 7
        %v1483 = vsub.s32 %v1480, %v1482
        %v1484 = vrot.slane %v1477, %v1483
        %v1485 = vcombine.low %v1380, %v1444
        %v1487 = vunpack.c.l.s4 1983009808
        %v1488 = vunpack.c.0.s8 %v1487
        %v1489 = vlaneseq
        %v1490 = vshrl.u32 %v1489, 7
        %v1491 = vsub.s32 %v1488, %v1490
        %v1492 = vrot.slane %v1485, %v1491
        %v1493 = vcombine.low %v1484, %v1492
        %v1495 = vunpack.c.l.s4 1934713408
        %v1496 = vunpack.c.0.s8 %v1495
        %v1497 = vlaneseq
        %v1498 = vshrl.u32 %v1497, 7
        %v1499 = vsub.s32 %v1496, %v1498
        %v1500 = vrot.slane %v1493, %v1499
        %v1501 = vcombine.high %v1500, 0
        %v1504 = vpack.i.b16 %v1500, %v1475
        %v1505 = vshrl.u32 %v1475, 16
        %v1506 = vshrl.u32 %v1500, 16
        %v1507 = vpack.i.b16 %v1506, %v1505
        %v1510 = vpack.i.b16 %v1501, %v1476
        %v1511 = vshrl.u32 %v1476, 16
        %v1512 = vshrl.u32 %v1501, 16
        %v1513 = vpack.i.b16 %v1512, %v1511
        %vm1514 = vcmask 64512
        %v1516 = vsel %vm1514, %v1086, 0
        %vm1518 = vcmask 1043456
        %v1520 = vsel %vm1518, %v1504, 0
        %1522 = vmatprep.subr.bf16.mxu0 0
        %1523 = vmatpush1.bf16.msra.mxu0 %v1520
        %1524 = vmatprep.subr.bf16.mxu0 0
        %1525 = vmatpush1.bf16.msra.mxu0 0
        %1526 = vmatprep.subr.bf16.mxu0 0
        %1527 = vmatpush1.bf16.msra.mxu0 0
        %1528 = vmatprep.subr.bf16.mxu0 0
        %1529 = vmatpush1.bf16.msra.mxu0 0
        %1530 = vmatprep.subr.bf16.mxu0 0
        %1531 = vmatpush1.bf16.msra.mxu0 0
        %1532 = vmatprep.subr.bf16.mxu0 0
        %1533 = vmatpush1.bf16.msra.mxu0 0
        %1534 = vmatprep.subr.bf16.mxu0 0
        %1535 = vmatpush1.bf16.msra.mxu0 0
        %1536 = vmatprep.subr.bf16.mxu0 0
        %1537 = vmatpush1.bf16.msra.mxu0 0
        %1538 = vmatprep.subr.bf16.mxu0 0
        %1539 = vmatpush1.bf16.msra.mxu0 0
        %1540 = vmatprep.subr.bf16.mxu0 0
        %1541 = vmatpush1.bf16.msra.mxu0 0
        %1542 = vmatprep.subr.bf16.mxu0 0
        %1543 = vmatpush1.bf16.msra.mxu0 0
        %1544 = vmatprep.subr.bf16.mxu0 0
        %1545 = vmatpush1.bf16.msra.mxu0 0
        %1546 = vmatprep.subr.bf16.mxu0 0
        %1547 = vmatpush1.bf16.msra.mxu0 0
        %1548 = vmatprep.subr.bf16.mxu0 0
        %1549 = vmatpush1.bf16.msra.mxu0 0
        %1550 = vmatprep.subr.bf16.mxu0 0
        %1551 = vmatpush1.bf16.msra.mxu0 0
        %1552 = vmatprep.subr.bf16.mxu0 0
        %1553 = vmatpush1.bf16.msra.mxu0 0
        %1554 = vmatprep.mubr.bf16.mxu0 0
        %1555 = vmatmul.mubr.bf16.gmra.mrb[0].mxu0 %v1516
        %v1556 = vpop.f32.mrb[0].mxu0
        %v1557 = vadd.f32 0.0, %v1556
        %v1558 = vpop.f32.mrb[0].mxu0
        %v1559 = vpop.f32.mrb[0].mxu0
        %v1560 = vpop.f32.mrb[0].mxu0
        %1561 = vdwg.mxu0
        %v1563 = vsel %vm1514, %v1089, 0
        %v1566 = vsel %vm1518, %v1507, 0
        %1568 = vmatprep.subr.bf16.mxu0 0
        %1569 = vmatpush1.bf16.msra.mxu0 %v1566
        %1570 = vmatprep.subr.bf16.mxu0 0
        %1571 = vmatpush1.bf16.msra.mxu0 0
        %1572 = vmatprep.subr.bf16.mxu0 0
        %1573 = vmatpush1.bf16.msra.mxu0 0
        %1574 = vmatprep.subr.bf16.mxu0 0
        %1575 = vmatpush1.bf16.msra.mxu0 0
        %1576 = vmatprep.subr.bf16.mxu0 0
        %1577 = vmatpush1.bf16.msra.mxu0 0
        %1578 = vmatprep.subr.bf16.mxu0 0
        %1579 = vmatpush1.bf16.msra.mxu0 0
        %1580 = vmatprep.subr.bf16.mxu0 0
        %1581 = vmatpush1.bf16.msra.mxu0 0
        %1582 = vmatprep.subr.bf16.mxu0 0
        %1583 = vmatpush1.bf16.msra.mxu0 0
        %1584 = vmatprep.subr.bf16.mxu0 0
        %1585 = vmatpush1.bf16.msra.mxu0 0
        %1586 = vmatprep.subr.bf16.mxu0 0
        %1587 = vmatpush1.bf16.msra.mxu0 0
        %1588 = vmatprep.subr.bf16.mxu0 0
        %1589 = vmatpush1.bf16.msra.mxu0 0
        %1590 = vmatprep.subr.bf16.mxu0 0
        %1591 = vmatpush1.bf16.msra.mxu0 0
        %1592 = vmatprep.subr.bf16.mxu0 0
        %1593 = vmatpush1.bf16.msra.mxu0 0
        %1594 = vmatprep.subr.bf16.mxu0 0
        %1595 = vmatpush1.bf16.msra.mxu0 0
        %1596 = vmatprep.subr.bf16.mxu0 0
        %1597 = vmatpush1.bf16.msra.mxu0 0
        %1598 = vmatprep.subr.bf16.mxu0 0
        %1599 = vmatpush1.bf16.msra.mxu0 0
        %1600 = vmatprep.mubr.bf16.mxu0 0
        %1601 = vmatmul.mubr.bf16.gmra.mrb[0].mxu0 %v1563
        %v1602 = vpop.f32.mrb[0].mxu0
        %v1603 = vadd.f32 0.0, %v1602
        %v1604 = vpop.f32.mrb[0].mxu0
        %v1605 = vpop.f32.mrb[0].mxu0
        %v1606 = vpop.f32.mrb[0].mxu0
        %1607 = vdwg.mxu0
        %v1609 = vsel %vm1514, %v1092, 0
        %v1612 = vsel %vm1518, %v1510, 0
        %1614 = vmatprep.subr.bf16.mxu0 0
        %1615 = vmatpush1.bf16.msra.mxu0 %v1612
        %1616 = vmatprep.subr.bf16.mxu0 0
        %1617 = vmatpush1.bf16.msra.mxu0 0
        %1618 = vmatprep.subr.bf16.mxu0 0
        %1619 = vmatpush1.bf16.msra.mxu0 0
        %1620 = vmatprep.subr.bf16.mxu0 0
        %1621 = vmatpush1.bf16.msra.mxu0 0
        %1622 = vmatprep.subr.bf16.mxu0 0
        %1623 = vmatpush1.bf16.msra.mxu0 0
        %1624 = vmatprep.subr.bf16.mxu0 0
        %1625 = vmatpush1.bf16.msra.mxu0 0
        %1626 = vmatprep.subr.bf16.mxu0 0
        %1627 = vmatpush1.bf16.msra.mxu0 0
        %1628 = vmatprep.subr.bf16.mxu0 0
        %1629 = vmatpush1.bf16.msra.mxu0 0
        %1630 = vmatprep.subr.bf16.mxu0 0
        %1631 = vmatpush1.bf16.msra.mxu0 0
        %1632 = vmatprep.subr.bf16.mxu0 0
        %1633 = vmatpush1.bf16.msra.mxu0 0
        %1634 = vmatprep.subr.bf16.mxu0 0
        %1635 = vmatpush1.bf16.msra.mxu0 0
        %1636 = vmatprep.subr.bf16.mxu0 0
        %1637 = vmatpush1.bf16.msra.mxu0 0
        %1638 = vmatprep.subr.bf16.mxu0 0
        %1639 = vmatpush1.bf16.msra.mxu0 0
        %1640 = vmatprep.subr.bf16.mxu0 0
        %1641 = vmatpush1.bf16.msra.mxu0 0
        %1642 = vmatprep.subr.bf16.mxu0 0
        %1643 = vmatpush1.bf16.msra.mxu0 0
        %1644 = vmatprep.subr.bf16.mxu0 0
        %1645 = vmatpush1.bf16.msra.mxu0 0
        %1646 = vmatprep.mubr.bf16.mxu0 0
        %1647 = vmatmul.mubr.bf16.gmra.mrb[0].mxu0 %v1609
        %v1648 = vpop.f32.mrb[0].mxu0
        %v1649 = vadd.f32 0.0, %v1648
        %v1650 = vpop.f32.mrb[0].mxu0
        %v1651 = vpop.f32.mrb[0].mxu0
        %v1652 = vpop.f32.mrb[0].mxu0
        %1653 = vdwg.mxu0
        %v1655 = vsel %vm1514, %v1095, 0
        %v1658 = vsel %vm1518, %v1513, 0
        %1660 = vmatprep.subr.bf16.mxu0 0
        %1661 = vmatpush1.bf16.msra.mxu0 %v1658
        %1662 = vmatprep.subr.bf16.mxu0 0
        %1663 = vmatpush1.bf16.msra.mxu0 0
        %1664 = vmatprep.subr.bf16.mxu0 0
        %1665 = vmatpush1.bf16.msra.mxu0 0
        %1666 = vmatprep.subr.bf16.mxu0 0
        %1667 = vmatpush1.bf16.msra.mxu0 0
        %1668 = vmatprep.subr.bf16.mxu0 0
        %1669 = vmatpush1.bf16.msra.mxu0 0
        %1670 = vmatprep.subr.bf16.mxu0 0
        %1671 = vmatpush1.bf16.msra.mxu0 0
        %1672 = vmatprep.subr.bf16.mxu0 0
        %1673 = vmatpush1.bf16.msra.mxu0 0
        %1674 = vmatprep.subr.bf16.mxu0 0
        %1675 = vmatpush1.bf16.msra.mxu0 0
        %1676 = vmatprep.subr.bf16.mxu0 0
        %1677 = vmatpush1.bf16.msra.mxu0 0
        %1678 = vmatprep.subr.bf16.mxu0 0
        %1679 = vmatpush1.bf16.msra.mxu0 0
        %1680 = vmatprep.subr.bf16.mxu0 0
        %1681 = vmatpush1.bf16.msra.mxu0 0
        %1682 = vmatprep.subr.bf16.mxu0 0
        %1683 = vmatpush1.bf16.msra.mxu0 0
        %1684 = vmatprep.subr.bf16.mxu0 0
        %1685 = vmatpush1.bf16.msra.mxu0 0
        %1686 = vmatprep.subr.bf16.mxu0 0
        %1687 = vmatpush1.bf16.msra.mxu0 0
        %1688 = vmatprep.subr.bf16.mxu0 0
        %1689 = vmatpush1.bf16.msra.mxu0 0
        %1690 = vmatprep.subr.bf16.mxu0 0
        %1691 = vmatpush1.bf16.msra.mxu0 0
        %1692 = vmatprep.mubr.bf16.mxu0 0
        %1693 = vmatmul.mubr.bf16.gmra.mrb[0].mxu0 %v1655
        %v1694 = vpop.f32.mrb[0].mxu0
        %v1695 = vadd.f32 0.0, %v1694
        %v1696 = vpop.f32.mrb[0].mxu0
        %v1697 = vpop.f32.mrb[0].mxu0
        %v1698 = vpop.f32.mrb[0].mxu0
        %1699 = vdwg.mxu0
        %v1700 = vsel %vm1514, %v1557, -inf
        %1701 = vmax.xlane.f32.xlu0 %v1700
        %v1702 = vpop.xlane.xlu0 %1701
        %v1703 = vsel %vm1514, %v1603, -inf
        %1704 = vmax.xlane.f32.xlu0 %v1703
        %v1705 = vpop.xlane.xlu0 %1704
        %v1706 = vsel %vm1514, %v1649, -inf
        %1707 = vmax.xlane.f32.xlu0 %v1706
        %v1708 = vpop.xlane.xlu0 %1707
        %v1709 = vsel %vm1514, %v1695, -inf
        %1710 = vmax.xlane.f32.xlu0 %v1709
        %v1711 = vpop.xlane.xlu0 %1710
        %v1712 = vsub.f32 %v1557, %v1702
        %v1713 = vsub.f32 %v1603, %v1705
        %v1714 = vsub.f32 %v1649, %v1708
        %v1715 = vsub.f32 %v1695, %v1711
        %v1716 = vpack.c.bf16 %v1712, %v1712
        %v1717 = vpack.c.bf16 %v1713, %v1713
        %v1718 = vpack.c.bf16 %v1714, %v1714
        %v1719 = vpack.c.bf16 %v1715, %v1715
        %v1721 = vmul.bf16 %v1716, 1069105081
        %v1722 = vpow.bf16.pop %v1721
        %v1724 = vmul.bf16 %v1717, 1069105081
        %v1725 = vpow.bf16.pop %v1724
        %v1727 = vmul.bf16 %v1718, 1069105081
        %v1728 = vpow.bf16.pop %v1727
        %v1730 = vmul.bf16 %v1719, 1069105081
        %v1731 = vpow.bf16.pop %v1730
        %v1732 = vunpack.c.l.bf16 %v1722
        %v1733 = vunpack.c.l.bf16 %v1725
        %v1734 = vunpack.c.l.bf16 %v1728
        %v1735 = vunpack.c.l.bf16 %v1731
        %v1736 = vsel %vm1514, %v1732, 0.0
        %1737 = vadd.xlane.f32.xlu0 %v1736
        %v1738 = vpop.xlane.xlu0 %1737
        %v1739 = vsel %vm1514, %v1733, 0.0
        %1740 = vadd.xlane.f32.xlu0 %v1739
        %v1741 = vpop.xlane.xlu0 %1740
        %v1742 = vsel %vm1514, %v1734, 0.0
        %1743 = vadd.xlane.f32.xlu0 %v1742
        %v1744 = vpop.xlane.xlu0 %1743
        %v1745 = vsel %vm1514, %v1735, 0.0
        %1746 = vadd.xlane.f32.xlu0 %v1745
        %v1747 = vpop.xlane.xlu0 %1746
        %v1748 = vrcp.pop %v1738
        %v1749 = vrcp.pop %v1741
        %v1750 = vrcp.pop %v1744
        %v1751 = vrcp.pop %v1747
        %v1752 = vmul.f32 %v1732, %v1748
        %v1753 = vmul.f32 %v1733, %v1749
        %v1754 = vmul.f32 %v1734, %v1750
        %v1755 = vmul.f32 %v1735, %v1751
        %v1756 = vpack.c.bf16 %v1752, %v1752
        %v1757 = vpack.c.bf16 %v1753, %v1753
        %v1758 = vpack.c.bf16 %v1754, %v1754
        %v1759 = vpack.c.bf16 %v1755, %v1755
        %1760 = vxpose.xlu0.c.b16.start [1/8] %v1026, 128
        %1761 = vxpose.xlu0.c.b16.cont [2/8] 0, 128
        %1762 = vxpose.xlu0.c.b16.cont [3/8] 0, 128
        %1763 = vxpose.xlu0.c.b16.cont [4/8] 0, 128
        %1764 = vxpose.xlu0.c.b16.cont [5/8] 0, 128
        %1765 = vxpose.xlu0.c.b16.cont [6/8] 0, 128
        %1766 = vxpose.xlu0.c.b16.cont [7/8] 0, 128
        %1767 = vxpose.xlu0.c.b16.end [8/8] 0, 128
        %v1768 = vpop.trf.xlu0
        %v1769 = vpop.trf.xlu0
        %v1770 = vpop.trf.xlu0
        %v1771 = vpop.trf.xlu0
        %v1772 = vpop.trf.xlu0
        %v1773 = vpop.trf.xlu0
        %v1774 = vpop.trf.xlu0
        %v1775 = vpop.trf.xlu0
        %1776 = vxpose.xlu0.c.b16.start [1/8] %v1027, 128
        %1777 = vxpose.xlu0.c.b16.cont [2/8] 0, 128
        %1778 = vxpose.xlu0.c.b16.cont [3/8] 0, 128
        %1779 = vxpose.xlu0.c.b16.cont [4/8] 0, 128
        %1780 = vxpose.xlu0.c.b16.cont [5/8] 0, 128
        %1781 = vxpose.xlu0.c.b16.cont [6/8] 0, 128
        %1782 = vxpose.xlu0.c.b16.cont [7/8] 0, 128
        %1783 = vxpose.xlu0.c.b16.end [8/8] 0, 128
        %v1784 = vpop.trf.xlu0
        %v1785 = vpop.trf.xlu0
        %v1786 = vpop.trf.xlu0
        %v1787 = vpop.trf.xlu0
        %v1788 = vpop.trf.xlu0
        %v1789 = vpop.trf.xlu0
        %v1790 = vpop.trf.xlu0
        %v1791 = vpop.trf.xlu0
        %1792 = vxpose.xlu0.c.b16.start [1/8] %v1028, 128
        %1793 = vxpose.xlu0.c.b16.cont [2/8] 0, 128
        %1794 = vxpose.xlu0.c.b16.cont [3/8] 0, 128
        %1795 = vxpose.xlu0.c.b16.cont [4/8] 0, 128
        %1796 = vxpose.xlu0.c.b16.cont [5/8] 0, 128
        %1797 = vxpose.xlu0.c.b16.cont [6/8] 0, 128
        %1798 = vxpose.xlu0.c.b16.cont [7/8] 0, 128
        %1799 = vxpose.xlu0.c.b16.end [8/8] 0, 128
        %v1800 = vpop.trf.xlu0
        %v1801 = vpop.trf.xlu0
        %v1802 = vpop.trf.xlu0
        %v1803 = vpop.trf.xlu0
        %v1804 = vpop.trf.xlu0
        %v1805 = vpop.trf.xlu0
        %v1806 = vpop.trf.xlu0
        %v1807 = vpop.trf.xlu0
        %1808 = vxpose.xlu0.c.b16.start [1/8] %v1029, 128
        %1809 = vxpose.xlu0.c.b16.cont [2/8] 0, 128
        %1810 = vxpose.xlu0.c.b16.cont [3/8] 0, 128
        %1811 = vxpose.xlu0.c.b16.cont [4/8] 0, 128
        %1812 = vxpose.xlu0.c.b16.cont [5/8] 0, 128
        %1813 = vxpose.xlu0.c.b16.cont [6/8] 0, 128
        %1814 = vxpose.xlu0.c.b16.cont [7/8] 0, 128
        %1815 = vxpose.xlu0.c.b16.end [8/8] 0, 128
        %v1816 = vpop.trf.xlu0
        %v1817 = vpop.trf.xlu0
        %v1818 = vpop.trf.xlu0
        %v1819 = vpop.trf.xlu0
        %v1820 = vpop.trf.xlu0
        %v1821 = vpop.trf.xlu0
        %v1822 = vpop.trf.xlu0
        %v1823 = vpop.trf.xlu0
        %1824 = vxpose.xlu0.c.b16.start [1/8] %v1030, 128
        %1825 = vxpose.xlu0.c.b16.cont [2/8] 0, 128
        %1826 = vxpose.xlu0.c.b16.cont [3/8] 0, 128
        %1827 = vxpose.xlu0.c.b16.cont [4/8] 0, 128
        %1828 = vxpose.xlu0.c.b16.cont [5/8] 0, 128
        %1829 = vxpose.xlu0.c.b16.cont [6/8] 0, 128
        %1830 = vxpose.xlu0.c.b16.cont [7/8] 0, 128
        %1831 = vxpose.xlu0.c.b16.end [8/8] 0, 128
        %v1832 = vpop.trf.xlu0
        %v1833 = vpop.trf.xlu0
        %v1834 = vpop.trf.xlu0
        %v1835 = vpop.trf.xlu0
        %v1836 = vpop.trf.xlu0
        %v1837 = vpop.trf.xlu0
        %v1838 = vpop.trf.xlu0
        %v1839 = vpop.trf.xlu0
        %1840 = vxpose.xlu0.c.b16.start [1/8] %v1031, 128
        %1841 = vxpose.xlu0.c.b16.cont [2/8] 0, 128
        %1842 = vxpose.xlu0.c.b16.cont [3/8] 0, 128
        %1843 = vxpose.xlu0.c.b16.cont [4/8] 0, 128
        %1844 = vxpose.xlu0.c.b16.cont [5/8] 0, 128
        %1845 = vxpose.xlu0.c.b16.cont [6/8] 0, 128
        %1846 = vxpose.xlu0.c.b16.cont [7/8] 0, 128
        %1847 = vxpose.xlu0.c.b16.end [8/8] 0, 128
        %v1848 = vpop.trf.xlu0
        %v1849 = vpop.trf.xlu0
        %v1850 = vpop.trf.xlu0
        %v1851 = vpop.trf.xlu0
        %v1852 = vpop.trf.xlu0
        %v1853 = vpop.trf.xlu0
        %v1854 = vpop.trf.xlu0
        %v1855 = vpop.trf.xlu0
        %1856 = vxpose.xlu0.c.b16.start [1/8] %v1032, 128
        %1857 = vxpose.xlu0.c.b16.cont [2/8] 0, 128
        %1858 = vxpose.xlu0.c.b16.cont [3/8] 0, 128
        %1859 = vxpose.xlu0.c.b16.cont [4/8] 0, 128
        %1860 = vxpose.xlu0.c.b16.cont [5/8] 0, 128
        %1861 = vxpose.xlu0.c.b16.cont [6/8] 0, 128
        %1862 = vxpose.xlu0.c.b16.cont [7/8] 0, 128
        %1863 = vxpose.xlu0.c.b16.end [8/8] 0, 128
        %v1864 = vpop.trf.xlu0
        %v1865 = vpop.trf.xlu0
        %v1866 = vpop.trf.xlu0
        %v1867 = vpop.trf.xlu0
        %v1868 = vpop.trf.xlu0
        %v1869 = vpop.trf.xlu0
        %v1870 = vpop.trf.xlu0
        %v1871 = vpop.trf.xlu0
        %1872 = vxpose.xlu0.c.b16.start [1/8] %v1033, 128
        %1873 = vxpose.xlu0.c.b16.cont [2/8] 0, 128
        %1874 = vxpose.xlu0.c.b16.cont [3/8] 0, 128
        %1875 = vxpose.xlu0.c.b16.cont [4/8] 0, 128
        %1876 = vxpose.xlu0.c.b16.cont [5/8] 0, 128
        %1877 = vxpose.xlu0.c.b16.cont [6/8] 0, 128
        %1878 = vxpose.xlu0.c.b16.cont [7/8] 0, 128
        %1879 = vxpose.xlu0.c.b16.end [8/8] 0, 128
        %v1880 = vpop.trf.xlu0
        %v1881 = vpop.trf.xlu0
        %v1882 = vpop.trf.xlu0
        %v1883 = vpop.trf.xlu0
        %v1884 = vpop.trf.xlu0
        %v1885 = vpop.trf.xlu0
        %v1886 = vpop.trf.xlu0
        %v1887 = vpop.trf.xlu0
        %v1888 = vcombine.low %v1768, %v1832
        %v1890 = vunpack.c.l.s4 1983009808
        %v1891 = vunpack.c.0.s8 %v1890
        %v1892 = vlaneseq
        %v1893 = vshrl.u32 %v1892, 7
        %v1894 = vsub.s32 %v1891, %v1893
        %v1895 = vrot.slane %v1888, %v1894
        %v1896 = vcombine.low %v1800, %v1864
        %v1898 = vunpack.c.l.s4 1983009808
        %v1899 = vunpack.c.0.s8 %v1898
        %v1900 = vlaneseq
        %v1901 = vshrl.u32 %v1900, 7
        %v1902 = vsub.s32 %v1899, %v1901
        %v1903 = vrot.slane %v1896, %v1902
        %v1904 = vcombine.low %v1895, %v1903
        %v1905 = vcombine.high %v1895, %v1903
        %v1907 = vunpack.c.l.s4 1934713408
        %v1908 = vunpack.c.0.s8 %v1907
        %v1909 = vlaneseq
        %v1910 = vshrl.u32 %v1909, 7
        %v1911 = vsub.s32 %v1908, %v1910
        %v1912 = vrot.slane %v1904, %v1911
        %v1914 = vunpack.c.l.s4 1934713408
        %v1915 = vunpack.c.0.s8 %v1914
        %v1916 = vlaneseq
        %v1917 = vshrl.u32 %v1916, 7
        %v1918 = vsub.s32 %v1915, %v1917
        %v1919 = vrot.slane %v1905, %v1918
        %v1920 = vcombine.high %v1912, 0
        %v1921 = vcombine.high %v1919, 0
        %v1922 = vcombine.low %v1784, %v1848
        %v1924 = vunpack.c.l.s4 1983009808
        %v1925 = vunpack.c.0.s8 %v1924
        %v1926 = vlaneseq
        %v1927 = vshrl.u32 %v1926, 7
        %v1928 = vsub.s32 %v1925, %v1927
        %v1929 = vrot.slane %v1922, %v1928
        %v1930 = vcombine.low %v1816, %v1880
        %v1932 = vunpack.c.l.s4 1983009808
        %v1933 = vunpack.c.0.s8 %v1932
        %v1934 = vlaneseq
        %v1935 = vshrl.u32 %v1934, 7
        %v1936 = vsub.s32 %v1933, %v1935
        %v1937 = vrot.slane %v1930, %v1936
        %v1938 = vcombine.low %v1929, %v1937
        %v1939 = vcombine.high %v1929, %v1937
        %v1941 = vunpack.c.l.s4 1934713408
        %v1942 = vunpack.c.0.s8 %v1941
        %v1943 = vlaneseq
        %v1944 = vshrl.u32 %v1943, 7
        %v1945 = vsub.s32 %v1942, %v1944
        %v1946 = vrot.slane %v1938, %v1945
        %v1948 = vunpack.c.l.s4 1934713408
        %v1949 = vunpack.c.0.s8 %v1948
        %v1950 = vlaneseq
        %v1951 = vshrl.u32 %v1950, 7
        %v1952 = vsub.s32 %v1949, %v1951
        %v1953 = vrot.slane %v1939, %v1952
        %v1954 = vcombine.high %v1946, 0
        %v1955 = vcombine.high %v1953, 0
        %v1958 = vpack.i.b16 %v1946, %v1912
        %v1960 = vshrl.u32 %v1912, 16
        %v1961 = vshrl.u32 %v1946, 16
        %v1962 = vpack.i.b16 %v1961, %v1960
        %v1966 = vpack.i.b16 %v1954, %v1920
        %v1968 = vshrl.u32 %v1920, 16
        %v1969 = vshrl.u32 %v1954, 16
        %v1970 = vpack.i.b16 %v1969, %v1968
        %v1974 = vpack.i.b16 %v1953, %v1919
        %v1976 = vshrl.u32 %v1919, 16
        %v1977 = vshrl.u32 %v1953, 16
        %v1978 = vpack.i.b16 %v1977, %v1976
        %v1982 = vpack.i.b16 %v1955, %v1921
        %v1984 = vshrl.u32 %v1921, 16
        %v1985 = vshrl.u32 %v1955, 16
        %v1986 = vpack.i.b16 %v1985, %v1984
        %1988 = vxpose.xlu0.c.b16.start [1/8] %v1958, 128
        %1989 = vxpose.xlu0.c.b16.cont [2/8] 0, 128
        %1990 = vxpose.xlu0.c.b16.cont [3/8] 0, 128
        %1991 = vxpose.xlu0.c.b16.cont [4/8] 0, 128
        %1992 = vxpose.xlu0.c.b16.cont [5/8] 0, 128
        %1993 = vxpose.xlu0.c.b16.cont [6/8] 0, 128
        %1994 = vxpose.xlu0.c.b16.cont [7/8] 0, 128
        %1995 = vxpose.xlu0.c.b16.end [8/8] 0, 128
        %v1996 = vpop.trf.xlu0
        %v1997 = vpop.trf.xlu0
        %v1998 = vpop.trf.xlu0
        %v1999 = vpop.trf.xlu0
        %v2000 = vpop.trf.xlu0
        %v2001 = vpop.trf.xlu0
        %v2002 = vpop.trf.xlu0
        %v2003 = vpop.trf.xlu0
        %2004 = vxpose.xlu0.c.b16.start [1/8] %v1962, 128
        %2005 = vxpose.xlu0.c.b16.cont [2/8] 0, 128
        %2006 = vxpose.xlu0.c.b16.cont [3/8] 0, 128
        %2007 = vxpose.xlu0.c.b16.cont [4/8] 0, 128
        %2008 = vxpose.xlu0.c.b16.cont [5/8] 0, 128
        %2009 = vxpose.xlu0.c.b16.cont [6/8] 0, 128
        %2010 = vxpose.xlu0.c.b16.cont [7/8] 0, 128
        %2011 = vxpose.xlu0.c.b16.end [8/8] 0, 128
        %v2012 = vpop.trf.xlu0
        %v2013 = vpop.trf.xlu0
        %v2014 = vpop.trf.xlu0
        %v2015 = vpop.trf.xlu0
        %v2016 = vpop.trf.xlu0
        %v2017 = vpop.trf.xlu0
        %v2018 = vpop.trf.xlu0
        %v2019 = vpop.trf.xlu0
        %2020 = vxpose.xlu0.c.b16.start [1/8] %v1966, 128
        %2021 = vxpose.xlu0.c.b16.cont [2/8] 0, 128
        %2022 = vxpose.xlu0.c.b16.cont [3/8] 0, 128
        %2023 = vxpose.xlu0.c.b16.cont [4/8] 0, 128
        %2024 = vxpose.xlu0.c.b16.cont [5/8] 0, 128
        %2025 = vxpose.xlu0.c.b16.cont [6/8] 0, 128
        %2026 = vxpose.xlu0.c.b16.cont [7/8] 0, 128
        %2027 = vxpose.xlu0.c.b16.end [8/8] 0, 128
        %v2028 = vpop.trf.xlu0
        %v2029 = vpop.trf.xlu0
        %v2030 = vpop.trf.xlu0
        %v2031 = vpop.trf.xlu0
        %v2032 = vpop.trf.xlu0
        %v2033 = vpop.trf.xlu0
        %v2034 = vpop.trf.xlu0
        %v2035 = vpop.trf.xlu0
        %2036 = vxpose.xlu0.c.b16.start [1/8] %v1970, 128
        %2037 = vxpose.xlu0.c.b16.cont [2/8] 0, 128
        %2038 = vxpose.xlu0.c.b16.cont [3/8] 0, 128
        %2039 = vxpose.xlu0.c.b16.cont [4/8] 0, 128
        %2040 = vxpose.xlu0.c.b16.cont [5/8] 0, 128
        %2041 = vxpose.xlu0.c.b16.cont [6/8] 0, 128
        %2042 = vxpose.xlu0.c.b16.cont [7/8] 0, 128
        %2043 = vxpose.xlu0.c.b16.end [8/8] 0, 128
        %v2044 = vpop.trf.xlu0
        %v2045 = vpop.trf.xlu0
        %v2046 = vpop.trf.xlu0
        %v2047 = vpop.trf.xlu0
        %v2048 = vpop.trf.xlu0
        %v2049 = vpop.trf.xlu0
        %v2050 = vpop.trf.xlu0
        %v2051 = vpop.trf.xlu0
        %2052 = vxpose.xlu0.c.b16.start [1/8] %v1974, 128
        %2053 = vxpose.xlu0.c.b16.cont [2/8] 0, 128
        %2054 = vxpose.xlu0.c.b16.cont [3/8] 0, 128
        %2055 = vxpose.xlu0.c.b16.cont [4/8] 0, 128
        %2056 = vxpose.xlu0.c.b16.cont [5/8] 0, 128
        %2057 = vxpose.xlu0.c.b16.cont [6/8] 0, 128
        %2058 = vxpose.xlu0.c.b16.cont [7/8] 0, 128
        %2059 = vxpose.xlu0.c.b16.end [8/8] 0, 128
        %v2060 = vpop.trf.xlu0
        %v2061 = vpop.trf.xlu0
        %v2062 = vpop.trf.xlu0
        %v2063 = vpop.trf.xlu0
        %v2064 = vpop.trf.xlu0
        %v2065 = vpop.trf.xlu0
        %v2066 = vpop.trf.xlu0
        %v2067 = vpop.trf.xlu0
        %2068 = vxpose.xlu0.c.b16.start [1/8] %v1978, 128
        %2069 = vxpose.xlu0.c.b16.cont [2/8] 0, 128
        %2070 = vxpose.xlu0.c.b16.cont [3/8] 0, 128
        %2071 = vxpose.xlu0.c.b16.cont [4/8] 0, 128
        %2072 = vxpose.xlu0.c.b16.cont [5/8] 0, 128
        %2073 = vxpose.xlu0.c.b16.cont [6/8] 0, 128
        %2074 = vxpose.xlu0.c.b16.cont [7/8] 0, 128
        %2075 = vxpose.xlu0.c.b16.end [8/8] 0, 128
        %v2076 = vpop.trf.xlu0
        %v2077 = vpop.trf.xlu0
        %v2078 = vpop.trf.xlu0
        %v2079 = vpop.trf.xlu0
        %v2080 = vpop.trf.xlu0
        %v2081 = vpop.trf.xlu0
        %v2082 = vpop.trf.xlu0
        %v2083 = vpop.trf.xlu0
        %2084 = vxpose.xlu0.c.b16.start [1/8] %v1982, 128
        %2085 = vxpose.xlu0.c.b16.cont [2/8] 0, 128
        %2086 = vxpose.xlu0.c.b16.cont [3/8] 0, 128
        %2087 = vxpose.xlu0.c.b16.cont [4/8] 0, 128
        %2088 = vxpose.xlu0.c.b16.cont [5/8] 0, 128
        %2089 = vxpose.xlu0.c.b16.cont [6/8] 0, 128
        %2090 = vxpose.xlu0.c.b16.cont [7/8] 0, 128
        %2091 = vxpose.xlu0.c.b16.end [8/8] 0, 128
        %v2092 = vpop.trf.xlu0
        %v2093 = vpop.trf.xlu0
        %v2094 = vpop.trf.xlu0
        %v2095 = vpop.trf.xlu0
        %v2096 = vpop.trf.xlu0
        %v2097 = vpop.trf.xlu0
        %v2098 = vpop.trf.xlu0
        %v2099 = vpop.trf.xlu0
        %2100 = vxpose.xlu0.c.b16.start [1/8] %v1986, 128
        %2101 = vxpose.xlu0.c.b16.cont [2/8] 0, 128
        %2102 = vxpose.xlu0.c.b16.cont [3/8] 0, 128
        %2103 = vxpose.xlu0.c.b16.cont [4/8] 0, 128
        %2104 = vxpose.xlu0.c.b16.cont [5/8] 0, 128
        %2105 = vxpose.xlu0.c.b16.cont [6/8] 0, 128
        %2106 = vxpose.xlu0.c.b16.cont [7/8] 0, 128
        %2107 = vxpose.xlu0.c.b16.end [8/8] 0, 128
        %v2108 = vpop.trf.xlu0
        %v2109 = vpop.trf.xlu0
        %v2110 = vpop.trf.xlu0
        %v2111 = vpop.trf.xlu0
        %v2112 = vpop.trf.xlu0
        %v2113 = vpop.trf.xlu0
        %v2114 = vpop.trf.xlu0
        %v2115 = vpop.trf.xlu0
        %v2116 = vcombine.low %v1996, %v2060
        %v2118 = vunpack.c.l.s4 1983009808
        %v2119 = vunpack.c.0.s8 %v2118
        %v2120 = vlaneseq
        %v2121 = vshrl.u32 %v2120, 7
        %v2122 = vsub.s32 %v2119, %v2121
        %v2123 = vrot.slane %v2116, %v2122
        %v2124 = vcombine.low %v2028, %v2092
        %v2126 = vunpack.c.l.s4 1983009808
        %v2127 = vunpack.c.0.s8 %v2126
        %v2128 = vlaneseq
        %v2129 = vshrl.u32 %v2128, 7
        %v2130 = vsub.s32 %v2127, %v2129
        %v2131 = vrot.slane %v2124, %v2130
        %v2132 = vcombine.low %v2123, %v2131
        %v2134 = vunpack.c.l.s4 1934713408
        %v2135 = vunpack.c.0.s8 %v2134
        %v2136 = vlaneseq
        %v2137 = vshrl.u32 %v2136, 7
        %v2138 = vsub.s32 %v2135, %v2137
        %v2139 = vrot.slane %v2132, %v2138
        %v2140 = vcombine.high %v2139, 0
        %v2141 = vcombine.low %v2012, %v2076
        %v2143 = vunpack.c.l.s4 1983009808
        %v2144 = vunpack.c.0.s8 %v2143
        %v2145 = vlaneseq
        %v2146 = vshrl.u32 %v2145, 7
        %v2147 = vsub.s32 %v2144, %v2146
        %v2148 = vrot.slane %v2141, %v2147
        %v2149 = vcombine.low %v2044, %v2108
        %v2151 = vunpack.c.l.s4 1983009808
        %v2152 = vunpack.c.0.s8 %v2151
        %v2153 = vlaneseq
        %v2154 = vshrl.u32 %v2153, 7
        %v2155 = vsub.s32 %v2152, %v2154
        %v2156 = vrot.slane %v2149, %v2155
        %v2157 = vcombine.low %v2148, %v2156
        %v2159 = vunpack.c.l.s4 1934713408
        %v2160 = vunpack.c.0.s8 %v2159
        %v2161 = vlaneseq
        %v2162 = vshrl.u32 %v2161, 7
        %v2163 = vsub.s32 %v2160, %v2162
        %v2164 = vrot.slane %v2157, %v2163
        %v2165 = vcombine.high %v2164, 0
        %v2168 = vpack.i.b16 %v2164, %v2139
        %v2169 = vshrl.u32 %v2139, 16
        %v2170 = vshrl.u32 %v2164, 16
        %v2171 = vpack.i.b16 %v2170, %v2169
        %v2174 = vpack.i.b16 %v2165, %v2140
        %v2175 = vshrl.u32 %v2140, 16
        %v2176 = vshrl.u32 %v2165, 16
        %v2177 = vpack.i.b16 %v2176, %v2175
        %v2179 = vsel %vm1514, %v2168, 0
        %v2182 = vsel %vm1514, %v1756, 0
        %2184 = vmatprep.subr.bf16.mxu0 0
        %2185 = vmatpush1.bf16.xpose.msra.mxu0 %v2182
        %2186 = vmatprep.subr.bf16.mxu0 0
        %2187 = vmatpush1.bf16.xpose.msra.mxu0 0
        %2188 = vmatprep.subr.bf16.mxu0 0
        %2189 = vmatpush1.bf16.xpose.msra.mxu0 0
        %2190 = vmatprep.subr.bf16.mxu0 0
        %2191 = vmatpush1.bf16.xpose.msra.mxu0 0
        %2192 = vmatprep.subr.bf16.mxu0 0
        %2193 = vmatpush1.bf16.xpose.msra.mxu0 0
        %2194 = vmatprep.subr.bf16.mxu0 0
        %2195 = vmatpush1.bf16.xpose.msra.mxu0 0
        %2196 = vmatprep.subr.bf16.mxu0 0
        %2197 = vmatpush1.bf16.xpose.msra.mxu0 0
        %2198 = vmatprep.subr.bf16.mxu0 0
        %2199 = vmatpush1.bf16.xpose.msra.mxu0 0
        %2200 = vmatprep.subr.bf16.mxu0 0
        %2201 = vmatpush1.bf16.xpose.msra.mxu0 0
        %2202 = vmatprep.subr.bf16.mxu0 0
        %2203 = vmatpush1.bf16.xpose.msra.mxu0 0
        %2204 = vmatprep.subr.bf16.mxu0 0
        %2205 = vmatpush1.bf16.xpose.msra.mxu0 0
        %2206 = vmatprep.subr.bf16.mxu0 0
        %2207 = vmatpush1.bf16.xpose.msra.mxu0 0
        %2208 = vmatprep.subr.bf16.mxu0 0
        %2209 = vmatpush1.bf16.xpose.msra.mxu0 0
        %2210 = vmatprep.subr.bf16.mxu0 0
        %2211 = vmatpush1.bf16.xpose.msra.mxu0 0
        %2212 = vmatprep.subr.bf16.mxu0 0
        %2213 = vmatpush1.bf16.xpose.msra.mxu0 0
        %2214 = vmatprep.subr.bf16.mxu0 0
        %2215 = vmatpush1.bf16.xpose.msra.mxu0 0
        %2216 = vmatprep.mubr.bf16.mxu0 0
        %2217 = vmatmul.mubr.bf16.gmra.mrb[0].mxu0 %v2179
        %v2218 = vpop.f32.mrb[0].mxu0
        %v2219 = vadd.f32 0.0, %v2218
        %v2220 = vpop.f32.mrb[0].mxu0
        %v2221 = vpop.f32.mrb[0].mxu0
        %v2222 = vpop.f32.mrb[0].mxu0
        %2223 = vdwg.mxu0
        %v2225 = vsel %vm1514, %v2171, 0
        %v2228 = vsel %vm1514, %v1757, 0
        %2230 = vmatprep.subr.bf16.mxu0 0
        %2231 = vmatpush1.bf16.xpose.msra.mxu0 %v2228
        %2232 = vmatprep.subr.bf16.mxu0 0
        %2233 = vmatpush1.bf16.xpose.msra.mxu0 0
        %2234 = vmatprep.subr.bf16.mxu0 0
        %2235 = vmatpush1.bf16.xpose.msra.mxu0 0
        %2236 = vmatprep.subr.bf16.mxu0 0
        %2237 = vmatpush1.bf16.xpose.msra.mxu0 0
        %2238 = vmatprep.subr.bf16.mxu0 0
        %2239 = vmatpush1.bf16.xpose.msra.mxu0 0
        %2240 = vmatprep.subr.bf16.mxu0 0
        %2241 = vmatpush1.bf16.xpose.msra.mxu0 0
        %2242 = vmatprep.subr.bf16.mxu0 0
        %2243 = vmatpush1.bf16.xpose.msra.mxu0 0
        %2244 = vmatprep.subr.bf16.mxu0 0
        %2245 = vmatpush1.bf16.xpose.msra.mxu0 0
        %2246 = vmatprep.subr.bf16.mxu0 0
        %2247 = vmatpush1.bf16.xpose.msra.mxu0 0
        %2248 = vmatprep.subr.bf16.mxu0 0
        %2249 = vmatpush1.bf16.xpose.msra.mxu0 0
        %2250 = vmatprep.subr.bf16.mxu0 0
        %2251 = vmatpush1.bf16.xpose.msra.mxu0 0
        %2252 = vmatprep.subr.bf16.mxu0 0
        %2253 = vmatpush1.bf16.xpose.msra.mxu0 0
        %2254 = vmatprep.subr.bf16.mxu0 0
        %2255 = vmatpush1.bf16.xpose.msra.mxu0 0
        %2256 = vmatprep.subr.bf16.mxu0 0
        %2257 = vmatpush1.bf16.xpose.msra.mxu0 0
        %2258 = vmatprep.subr.bf16.mxu0 0
        %2259 = vmatpush1.bf16.xpose.msra.mxu0 0
        %2260 = vmatprep.subr.bf16.mxu0 0
        %2261 = vmatpush1.bf16.xpose.msra.mxu0 0
        %2262 = vmatprep.mubr.bf16.mxu0 0
        %2263 = vmatmul.mubr.bf16.gmra.mrb[0].mxu0 %v2225
        %v2264 = vpop.f32.mrb[0].mxu0
        %v2265 = vadd.f32 0.0, %v2264
        %v2266 = vpop.f32.mrb[0].mxu0
        %v2267 = vpop.f32.mrb[0].mxu0
        %v2268 = vpop.f32.mrb[0].mxu0
        %2269 = vdwg.mxu0
        %v2271 = vsel %vm1514, %v2174, 0
        %v2274 = vsel %vm1514, %v1758, 0
        %2276 = vmatprep.subr.bf16.mxu0 0
        %2277 = vmatpush1.bf16.xpose.msra.mxu0 %v2274
        %2278 = vmatprep.subr.bf16.mxu0 0
        %2279 = vmatpush1.bf16.xpose.msra.mxu0 0
        %2280 = vmatprep.subr.bf16.mxu0 0
        %2281 = vmatpush1.bf16.xpose.msra.mxu0 0
        %2282 = vmatprep.subr.bf16.mxu0 0
        %2283 = vmatpush1.bf16.xpose.msra.mxu0 0
        %2284 = vmatprep.subr.bf16.mxu0 0
        %2285 = vmatpush1.bf16.xpose.msra.mxu0 0
        %2286 = vmatprep.subr.bf16.mxu0 0
        %2287 = vmatpush1.bf16.xpose.msra.mxu0 0
        %2288 = vmatprep.subr.bf16.mxu0 0
        %2289 = vmatpush1.bf16.xpose.msra.mxu0 0
        %2290 = vmatprep.subr.bf16.mxu0 0
        %2291 = vmatpush1.bf16.xpose.msra.mxu0 0
        %2292 = vmatprep.subr.bf16.mxu0 0
        %2293 = vmatpush1.bf16.xpose.msra.mxu0 0
        %2294 = vmatprep.subr.bf16.mxu0 0
        %2295 = vmatpush1.bf16.xpose.msra.mxu0 0
        %2296 = vmatprep.subr.bf16.mxu0 0
        %2297 = vmatpush1.bf16.xpose.msra.mxu0 0
        %2298 = vmatprep.subr.bf16.mxu0 0
        %2299 = vmatpush1.bf16.xpose.msra.mxu0 0
        %2300 = vmatprep.subr.bf16.mxu0 0
        %2301 = vmatpush1.bf16.xpose.msra.mxu0 0
        %2302 = vmatprep.subr.bf16.mxu0 0
        %2303 = vmatpush1.bf16.xpose.msra.mxu0 0
        %2304 = vmatprep.subr.bf16.mxu0 0
        %2305 = vmatpush1.bf16.xpose.msra.mxu0 0
        %2306 = vmatprep.subr.bf16.mxu0 0
        %2307 = vmatpush1.bf16.xpose.msra.mxu0 0
        %2308 = vmatprep.mubr.bf16.mxu0 0
        %2309 = vmatmul.mubr.bf16.gmra.mrb[0].mxu0 %v2271
        %v2310 = vpop.f32.mrb[0].mxu0
        %v2311 = vadd.f32 0.0, %v2310
        %v2312 = vpop.f32.mrb[0].mxu0
        %v2313 = vpop.f32.mrb[0].mxu0
        %v2314 = vpop.f32.mrb[0].mxu0
        %2315 = vdwg.mxu0
        %v2317 = vsel %vm1514, %v2177, 0
        %v2320 = vsel %vm1514, %v1759, 0
        %2322 = vmatprep.subr.bf16.mxu0 0
        %2323 = vmatpush1.bf16.xpose.msra.mxu0 %v2320
        %2324 = vmatprep.subr.bf16.mxu0 0
        %2325 = vmatpush1.bf16.xpose.msra.mxu0 0
        %2326 = vmatprep.subr.bf16.mxu0 0
        %2327 = vmatpush1.bf16.xpose.msra.mxu0 0
        %2328 = vmatprep.subr.bf16.mxu0 0
        %2329 = vmatpush1.bf16.xpose.msra.mxu0 0
        %2330 = vmatprep.subr.bf16.mxu0 0
        %2331 = vmatpush1.bf16.xpose.msra.mxu0 0
        %2332 = vmatprep.subr.bf16.mxu0 0
        %2333 = vmatpush1.bf16.xpose.msra.mxu0 0
        %2334 = vmatprep.subr.bf16.mxu0 0
        %2335 = vmatpush1.bf16.xpose.msra.mxu0 0
        %2336 = vmatprep.subr.bf16.mxu0 0
        %2337 = vmatpush1.bf16.xpose.msra.mxu0 0
        %2338 = vmatprep.subr.bf16.mxu0 0
        %2339 = vmatpush1.bf16.xpose.msra.mxu0 0
        %2340 = vmatprep.subr.bf16.mxu0 0
        %2341 = vmatpush1.bf16.xpose.msra.mxu0 0
        %2342 = vmatprep.subr.bf16.mxu0 0
        %2343 = vmatpush1.bf16.xpose.msra.mxu0 0
        %2344 = vmatprep.subr.bf16.mxu0 0
        %2345 = vmatpush1.bf16.xpose.msra.mxu0 0
        %2346 = vmatprep.subr.bf16.mxu0 0
        %2347 = vmatpush1.bf16.xpose.msra.mxu0 0
        %2348 = vmatprep.subr.bf16.mxu0 0
        %2349 = vmatpush1.bf16.xpose.msra.mxu0 0
        %2350 = vmatprep.subr.bf16.mxu0 0
        %2351 = vmatpush1.bf16.xpose.msra.mxu0 0
        %2352 = vmatprep.subr.bf16.mxu0 0
        %2353 = vmatpush1.bf16.xpose.msra.mxu0 0
        %2354 = vmatprep.mubr.bf16.mxu0 0
        %2355 = vmatmul.mubr.bf16.gmra.mrb[0].mxu0 %v2317
        %v2356 = vpop.f32.mrb[0].mxu0
        %v2357 = vadd.f32 0.0, %v2356
        %v2358 = vpop.f32.mrb[0].mxu0
        %v2359 = vpop.f32.mrb[0].mxu0
        %v2360 = vpop.f32.mrb[0].mxu0
        %2361 = vdwg.mxu0
        %2362 = vxpose.xlu0.b32.start [1/16] %v2219, 128
        %2363 = vxpose.xlu0.b32.cont [2/16] 0.0, 128
        %2364 = vxpose.xlu0.b32.cont [3/16] 0.0, 128
        %2365 = vxpose.xlu0.b32.cont [4/16] 0.0, 128
        %2366 = vxpose.xlu0.b32.cont [5/16] 0.0, 128
        %2367 = vxpose.xlu0.b32.cont [6/16] 0.0, 128
        %2368 = vxpose.xlu0.b32.cont [7/16] 0.0, 128
        %2369 = vxpose.xlu0.b32.cont [8/16] 0.0, 128
        %2370 = vxpose.xlu0.b32.cont [9/16] 0.0, 128
        %2371 = vxpose.xlu0.b32.cont [10/16] 0.0, 128
        %2372 = vxpose.xlu0.b32.cont [11/16] 0.0, 128
        %2373 = vxpose.xlu0.b32.cont [12/16] 0.0, 128
        %2374 = vxpose.xlu0.b32.cont [13/16] 0.0, 128
        %2375 = vxpose.xlu0.b32.cont [14/16] 0.0, 128
        %2376 = vxpose.xlu0.b32.cont [15/16] 0.0, 128
        %2377 = vxpose.xlu0.b32.end [16/16] 0.0, 128
        %v2378 = vpop.trf.xlu0
        %v2379 = vpop.trf.xlu0
        %v2380 = vpop.trf.xlu0
        %v2381 = vpop.trf.xlu0
        %v2382 = vpop.trf.xlu0
        %v2383 = vpop.trf.xlu0
        %v2384 = vpop.trf.xlu0
        %v2385 = vpop.trf.xlu0
        %v2386 = vpop.trf.xlu0
        %v2387 = vpop.trf.xlu0
        %v2388 = vpop.trf.xlu0
        %v2389 = vpop.trf.xlu0
        %v2390 = vpop.trf.xlu0
        %v2391 = vpop.trf.xlu0
        %v2392 = vpop.trf.xlu0
        %v2393 = vpop.trf.xlu0
        %2394 = vxpose.xlu0.b32.start [1/16] %v2265, 128
        %2395 = vxpose.xlu0.b32.cont [2/16] 0.0, 128
        %2396 = vxpose.xlu0.b32.cont [3/16] 0.0, 128
        %2397 = vxpose.xlu0.b32.cont [4/16] 0.0, 128
        %2398 = vxpose.xlu0.b32.cont [5/16] 0.0, 128
        %2399 = vxpose.xlu0.b32.cont [6/16] 0.0, 128
        %2400 = vxpose.xlu0.b32.cont [7/16] 0.0, 128
        %2401 = vxpose.xlu0.b32.cont [8/16] 0.0, 128
        %2402 = vxpose.xlu0.b32.cont [9/16] 0.0, 128
        %2403 = vxpose.xlu0.b32.cont [10/16] 0.0, 128
        %2404 = vxpose.xlu0.b32.cont [11/16] 0.0, 128
        %2405 = vxpose.xlu0.b32.cont [12/16] 0.0, 128
        %2406 = vxpose.xlu0.b32.cont [13/16] 0.0, 128
        %2407 = vxpose.xlu0.b32.cont [14/16] 0.0, 128
        %2408 = vxpose.xlu0.b32.cont [15/16] 0.0, 128
        %2409 = vxpose.xlu0.b32.end [16/16] 0.0, 128
        %v2410 = vpop.trf.xlu0
        %v2411 = vpop.trf.xlu0
        %v2412 = vpop.trf.xlu0
        %v2413 = vpop.trf.xlu0
        %v2414 = vpop.trf.xlu0
        %v2415 = vpop.trf.xlu0
        %v2416 = vpop.trf.xlu0
        %v2417 = vpop.trf.xlu0
        %v2418 = vpop.trf.xlu0
        %v2419 = vpop.trf.xlu0
        %v2420 = vpop.trf.xlu0
        %v2421 = vpop.trf.xlu0
        %v2422 = vpop.trf.xlu0
        %v2423 = vpop.trf.xlu0
        %v2424 = vpop.trf.xlu0
        %v2425 = vpop.trf.xlu0
        %2426 = vxpose.xlu0.b32.start [1/16] %v2311, 128
        %2427 = vxpose.xlu0.b32.cont [2/16] 0.0, 128
        %2428 = vxpose.xlu0.b32.cont [3/16] 0.0, 128
        %2429 = vxpose.xlu0.b32.cont [4/16] 0.0, 128
        %2430 = vxpose.xlu0.b32.cont [5/16] 0.0, 128
        %2431 = vxpose.xlu0.b32.cont [6/16] 0.0, 128
        %2432 = vxpose.xlu0.b32.cont [7/16] 0.0, 128
        %2433 = vxpose.xlu0.b32.cont [8/16] 0.0, 128
        %2434 = vxpose.xlu0.b32.cont [9/16] 0.0, 128
        %2435 = vxpose.xlu0.b32.cont [10/16] 0.0, 128
        %2436 = vxpose.xlu0.b32.cont [11/16] 0.0, 128
        %2437 = vxpose.xlu0.b32.cont [12/16] 0.0, 128
        %2438 = vxpose.xlu0.b32.cont [13/16] 0.0, 128
        %2439 = vxpose.xlu0.b32.cont [14/16] 0.0, 128
        %2440 = vxpose.xlu0.b32.cont [15/16] 0.0, 128
        %2441 = vxpose.xlu0.b32.end [16/16] 0.0, 128
        %v2442 = vpop.trf.xlu0
        %v2443 = vpop.trf.xlu0
        %v2444 = vpop.trf.xlu0
        %v2445 = vpop.trf.xlu0
        %v2446 = vpop.trf.xlu0
        %v2447 = vpop.trf.xlu0
        %v2448 = vpop.trf.xlu0
        %v2449 = vpop.trf.xlu0
        %v2450 = vpop.trf.xlu0
        %v2451 = vpop.trf.xlu0
        %v2452 = vpop.trf.xlu0
        %v2453 = vpop.trf.xlu0
        %v2454 = vpop.trf.xlu0
        %v2455 = vpop.trf.xlu0
        %v2456 = vpop.trf.xlu0
        %v2457 = vpop.trf.xlu0
        %2458 = vxpose.xlu0.b32.start [1/16] %v2357, 128
        %2459 = vxpose.xlu0.b32.cont [2/16] 0.0, 128
        %2460 = vxpose.xlu0.b32.cont [3/16] 0.0, 128
        %2461 = vxpose.xlu0.b32.cont [4/16] 0.0, 128
        %2462 = vxpose.xlu0.b32.cont [5/16] 0.0, 128
        %2463 = vxpose.xlu0.b32.cont [6/16] 0.0, 128
        %2464 = vxpose.xlu0.b32.cont [7/16] 0.0, 128
        %2465 = vxpose.xlu0.b32.cont [8/16] 0.0, 128
        %2466 = vxpose.xlu0.b32.cont [9/16] 0.0, 128
        %2467 = vxpose.xlu0.b32.cont [10/16] 0.0, 128
        %2468 = vxpose.xlu0.b32.cont [11/16] 0.0, 128
        %2469 = vxpose.xlu0.b32.cont [12/16] 0.0, 128
        %2470 = vxpose.xlu0.b32.cont [13/16] 0.0, 128
        %2471 = vxpose.xlu0.b32.cont [14/16] 0.0, 128
        %2472 = vxpose.xlu0.b32.cont [15/16] 0.0, 128
        %2473 = vxpose.xlu0.b32.end [16/16] 0.0, 128
        %v2474 = vpop.trf.xlu0
        %v2475 = vpop.trf.xlu0
        %v2476 = vpop.trf.xlu0
        %v2477 = vpop.trf.xlu0
        %v2478 = vpop.trf.xlu0
        %v2479 = vpop.trf.xlu0
        %v2480 = vpop.trf.xlu0
        %v2481 = vpop.trf.xlu0
        %v2482 = vpop.trf.xlu0
        %v2483 = vpop.trf.xlu0
        %v2484 = vpop.trf.xlu0
        %v2485 = vpop.trf.xlu0
        %v2486 = vpop.trf.xlu0
        %v2487 = vpop.trf.xlu0
        %v2488 = vpop.trf.xlu0
        %v2489 = vpop.trf.xlu0
        %v2490 = vcombine.low %v2378, %v2442
        %v2491 = vcombine.high %v2378, %v2442
        %v2493 = vunpack.c.l.s4 1983009808
        %v2494 = vunpack.c.0.s8 %v2493
        %v2495 = vlaneseq
        %v2496 = vshrl.u32 %v2495, 7
        %v2497 = vsub.s32 %v2494, %v2496
        %v2498 = vrot.slane %v2490, %v2497
        %v2500 = vunpack.c.l.s4 1983009808
        %v2501 = vunpack.c.0.s8 %v2500
        %v2502 = vlaneseq
        %v2503 = vshrl.u32 %v2502, 7
        %v2504 = vsub.s32 %v2501, %v2503
        %v2505 = vrot.slane %v2491, %v2504
        %v2506 = vcombine.low %v2410, %v2474
        %v2507 = vcombine.high %v2410, %v2474
        %v2509 = vunpack.c.l.s4 1983009808
        %v2510 = vunpack.c.0.s8 %v2509
        %v2511 = vlaneseq
        %v2512 = vshrl.u32 %v2511, 7
        %v2513 = vsub.s32 %v2510, %v2512
        %v2514 = vrot.slane %v2506, %v2513
        %v2516 = vunpack.c.l.s4 1983009808
        %v2517 = vunpack.c.0.s8 %v2516
        %v2518 = vlaneseq
        %v2519 = vshrl.u32 %v2518, 7
        %v2520 = vsub.s32 %v2517, %v2519
        %v2521 = vrot.slane %v2507, %v2520
        %v2522 = vcombine.low %v2498, %v2514
        %v2523 = vcombine.high %v2498, %v2514
        %v2525 = vunpack.c.l.s4 1934713408
        %v2526 = vunpack.c.0.s8 %v2525
        %v2527 = vlaneseq
        %v2528 = vshrl.u32 %v2527, 7
        %v2529 = vsub.s32 %v2526, %v2528
        %v2530 = vrot.slane %v2522, %v2529
        %v2532 = vunpack.c.l.s4 1934713408
        %v2533 = vunpack.c.0.s8 %v2532
        %v2534 = vlaneseq
        %v2535 = vshrl.u32 %v2534, 7
        %v2536 = vsub.s32 %v2533, %v2535
        %v2537 = vrot.slane %v2523, %v2536
        %v2538 = vcombine.low %v2505, %v2521
        %v2539 = vcombine.high %v2505, %v2521
        %v2541 = vunpack.c.l.s4 1934713408
        %v2542 = vunpack.c.0.s8 %v2541
        %v2543 = vlaneseq
        %v2544 = vshrl.u32 %v2543, 7
        %v2545 = vsub.s32 %v2542, %v2544
        %v2546 = vrot.slane %v2538, %v2545
        %v2548 = vunpack.c.l.s4 1934713408
        %v2549 = vunpack.c.0.s8 %v2548
        %v2550 = vlaneseq
        %v2551 = vshrl.u32 %v2550, 7
        %v2552 = vsub.s32 %v2549, %v2551
        %v2553 = vrot.slane %v2539, %v2552
        %v2554 = vcombine.high %v2530, 0.0
        %v2555 = vcombine.high %v2537, 0.0
        %v2556 = vcombine.high %v2546, 0.0
        %v2557 = vcombine.high %v2553, 0.0
        %v2558 = vcombine.low %v2530, %v2537
        %v2560 = vunpack.c.l.s4 1983009808
        %v2561 = vunpack.c.0.s8 %v2560
        %v2562 = vlaneseq
        %v2563 = vshrl.u32 %v2562, 7
        %v2564 = vsub.s32 %v2561, %v2563
        %v2565 = vrot.slane %v2558, %v2564
        %v2566 = vcombine.low %v2554, %v2555
        %v2568 = vunpack.c.l.s4 1983009808
        %v2569 = vunpack.c.0.s8 %v2568
        %v2570 = vlaneseq
        %v2571 = vshrl.u32 %v2570, 7
        %v2572 = vsub.s32 %v2569, %v2571
        %v2573 = vrot.slane %v2566, %v2572
        %v2574 = vcombine.low %v2546, %v2553
        %v2576 = vunpack.c.l.s4 1983009808
        %v2577 = vunpack.c.0.s8 %v2576
        %v2578 = vlaneseq
        %v2579 = vshrl.u32 %v2578, 7
        %v2580 = vsub.s32 %v2577, %v2579
        %v2581 = vrot.slane %v2574, %v2580
        %v2582 = vcombine.low %v2556, %v2557
        %v2584 = vunpack.c.l.s4 1983009808
        %v2585 = vunpack.c.0.s8 %v2584
        %v2586 = vlaneseq
        %v2587 = vshrl.u32 %v2586, 7
        %v2588 = vsub.s32 %v2585, %v2587
        %v2589 = vrot.slane %v2582, %v2588
        %v2590 = vcombine.low %v2565, %v2573
        %v2591 = vcombine.high %v2565, %v2573
        %v2593 = vunpack.c.l.s4 1934713408
        %v2594 = vunpack.c.0.s8 %v2593
        %v2595 = vlaneseq
        %v2596 = vshrl.u32 %v2595, 7
        %v2597 = vsub.s32 %v2594, %v2596
        %v2598 = vrot.slane %v2590, %v2597
        %v2600 = vunpack.c.l.s4 1934713408
        %v2601 = vunpack.c.0.s8 %v2600
        %v2602 = vlaneseq
        %v2603 = vshrl.u32 %v2602, 7
        %v2604 = vsub.s32 %v2601, %v2603
        %v2605 = vrot.slane %v2591, %v2604
        %v2606 = vcombine.low %v2581, %v2589
        %v2607 = vcombine.high %v2581, %v2589
        %v2609 = vunpack.c.l.s4 1934713408
        %v2610 = vunpack.c.0.s8 %v2609
        %v2611 = vlaneseq
        %v2612 = vshrl.u32 %v2611, 7
        %v2613 = vsub.s32 %v2610, %v2612
        %v2614 = vrot.slane %v2606, %v2613
        %v2616 = vunpack.c.l.s4 1934713408
        %v2617 = vunpack.c.0.s8 %v2616
        %v2618 = vlaneseq
        %v2619 = vshrl.u32 %v2618, 7
        %v2620 = vsub.s32 %v2617, %v2619
        %v2621 = vrot.slane %v2607, %v2620
        %v2622 = vcombine.low %v2598, %v2614
        %v2623 = vcombine.high %v2598, %v2614
        %v2624 = vcombine.low %v2605, %v2621
        %v2625 = vcombine.high %v2605, %v2621
        %2627 = vrot.lane.b32.xlu0 %v2623, 8
        %v2628 = vpop.permute.xlu0 %2627
        %2631 = vrot.lane.b32.xlu0 %v2624, 16
        %v2632 = vpop.permute.xlu0 %2631
        %2635 = vrot.lane.b32.xlu0 %v2625, 24
        %v2636 = vpop.permute.xlu0 %2635
        %v2638 = vsel %vm1514, %v2622, %v2628
        %vm2639 = vcmask 130048
        %v2640 = vsel %vm2639, %v2638, %v2632
        %vm2641 = vcmask 195584
        %v2642 = vsel %vm2641, %v2640, %v2636
        %v2643 = vpack.c.bf16 %v2642, %v2642
        %v2644 = vld [vmem:[%s9] sm:$0xf]
        %v2645 = vld [vmem:[%s9 + $0x4] sm:$0xf]
        %v2646 = vld [vmem:[%s9 + $0x8] sm:$0xf]
        %v2647 = vld [vmem:[%s9 + $0xc] sm:$0xf]
        %v2648 = vld [vmem:[%s10] sm:$0x1]
        %v2650 = vlaneseq
        %v2651 = vshrl.u32 %v2650, 7
        %v2652 = vsub.s32 0, %v2651
        %v2653 = vrot.slane %v2648, %v2652
        %v2659 = vunpack.c.l.b16 %v2644
        %v2660 = vunpack.c.l.b16 %v2645
        %v2661 = vunpack.c.l.b16 %v2646
        %v2662 = vunpack.c.l.b16 %v2647
        %v2663 = vpack.c.b16 %v2660, %v2659
        %v2664 = vpack.c.b16 %v2662, %v2661
        %v2668 = vsel %vm599, %v2643, 0
        %2670 = vmatprep.subr.bf16.mxu0 0
        %2671 = vmatpush1.bf16.msra.mxu0 %v2663
        %2672 = vmatprep.subr.bf16.mxu0 0
        %2673 = vmatpush1.bf16.msra.mxu0 %v2664
        %2674 = vmatprep.subr.bf16.mxu0 0
        %2675 = vmatpush1.bf16.msra.mxu0 0
        %2676 = vmatprep.subr.bf16.mxu0 0
        %2677 = vmatpush1.bf16.msra.mxu0 0
        %2678 = vmatprep.subr.bf16.mxu0 0
        %2679 = vmatpush1.bf16.msra.mxu0 0
        %2680 = vmatprep.subr.bf16.mxu0 0
        %2681 = vmatpush1.bf16.msra.mxu0 0
        %2682 = vmatprep.subr.bf16.mxu0 0
        %2683 = vmatpush1.bf16.msra.mxu0 0
        %2684 = vmatprep.subr.bf16.mxu0 0
        %2685 = vmatpush1.bf16.msra.mxu0 0
        %2686 = vmatprep.subr.bf16.mxu0 0
        %2687 = vmatpush1.bf16.msra.mxu0 0
        %2688 = vmatprep.subr.bf16.mxu0 0
        %2689 = vmatpush1.bf16.msra.mxu0 0
        %2690 = vmatprep.subr.bf16.mxu0 0
        %2691 = vmatpush1.bf16.msra.mxu0 0
        %2692 = vmatprep.subr.bf16.mxu0 0
        %2693 = vmatpush1.bf16.msra.mxu0 0
        %2694 = vmatprep.subr.bf16.mxu0 0
        %2695 = vmatpush1.bf16.msra.mxu0 0
        %2696 = vmatprep.subr.bf16.mxu0 0
        %2697 = vmatpush1.bf16.msra.mxu0 0
        %2698 = vmatprep.subr.bf16.mxu0 0
        %2699 = vmatpush1.bf16.msra.mxu0 0
        %2700 = vmatprep.subr.bf16.mxu0 0
        %2701 = vmatpush1.bf16.msra.mxu0 0
        %2702 = vmatprep.mubr.bf16.mxu0 0
        %2703 = vmatmul.mubr.bf16.gmra.mrb[0].mxu0 %v2668
        %v2704 = vpop.f32.mrb[0].mxu0
        %v2705 = vadd.f32 %v2653, %v2704
        %v2706 = vpop.f32.mrb[0].mxu0
        %v2707 = vpop.f32.mrb[0].mxu0
        %v2708 = vpop.f32.mrb[0].mxu0
        %2709 = vdwg.mxu0
        %2710 = vst.msk [vmem:[%s562] sm:$0xff] %vm599, %v2705
        %vm2711 = vcmask 60416
        %2712 = vst.msk [vmem:[%s568] sm:$0xf] %vm2711, %v1756
        %2713 = vst.msk [vmem:[%s568 + $0x4] sm:$0xf] %vm2711, %v1757
        %2714 = vst.msk [vmem:[%s568 + $0x8] sm:$0xf] %vm2711, %v1758
        %2715 = vst.msk [vmem:[%s568 + $0xc] sm:$0xf] %vm2711, %v1759
        %s2716 = sand.u32 %s305, 1
        %s2717 = scalar_lea.sflag [#allocation4], %s2716
        %s2718 = sand.u32 %s305, 1
        %s2719 = smul.addr %s2718, 8
        %s2720 = scalar_lea.vmem [#allocation13], %s2719
        %s2721 = sand.u32 %s333, 1
        %s2722 = sand.u32 %s333, 1
        %s2723 = smul.addr %s2722, 16
        %s2724 = scalar_lea.vmem [#allocation14], %s2723
        // Predicated region
        $region89: #{tpu_custom_call.1} parent=63 // pred_check
          %p2725 = pneg %p315
        $region90: #{tpu_custom_call.1} parent=63 // pred_check_branch
          %2727 = sbr.rel (%p2725) target = $region92
        $region91: #{tpu_custom_call.1} parent=63 // pred_region
          %s2729 = ssub.s32 128, 128
          %2730 = vsyncadd %s2717, %s2729
          %s2731 = smul.addr %s39, 2
          %s2732 = sadd.s32 %s40, %s2731
          %s2733 = smul.addr %s2732, 128
          %s2734 = scalar_lea.hbm %s11, %s2733
          %s2736 = sshll.u32 %s2720, 4
          %s2737 = int_to_ptr.vmem [resolvable:$true] %s2736
          %2739 = dma.vmem_to_hbm [thread:$0]  %s2737, 128, %s2734, %s2717
        $region92: #{tpu_custom_call.1} parent=63 // pred_fallthru
          _
        // Predicated region
        $region93: #{tpu_custom_call.1} parent=63 // pred_check
          %p2740 = pneg %p343
        $region94: #{tpu_custom_call.1} parent=63 // pred_check_branch
          %2742 = sbr.rel (%p2740) target = $region96
        $region95: #{tpu_custom_call.1} parent=63 // pred_region
          %s2743 = smul.addr %s39, 8
          %s2744 = sadd.s32 %s40, %s2743
          %s2745 = smul.addr %s2744, 4
          %s2746 = scalar_lea.vmem %s12, %s2745
          // Predicated region
          $region97: #{tpu_custom_call.1} parent=95 // pred_check
            _
          $region98: #{tpu_custom_call.1} parent=95 // pred_check_branch
            %2748 = sbr.rel (0) target = $region100
          $region99: #{tpu_custom_call.1} parent=95 // pred_region
            // Predicated region
            $region101: #{tpu_custom_call.1} parent=99 // pred_check
              _
            $region102: #{tpu_custom_call.1} parent=99 // pred_check_branch
              %2750 = sbr.rel target = $region104
            $region103: #{tpu_custom_call.1} parent=99 // pred_region
              // Predicated region
              $region116: #{tpu_custom_call.1} parent=103 // pred_check
                _
              $region117: #{tpu_custom_call.1} parent=103 // pred_check_branch
                %2771 = sbr.rel (0) target = $region119
              $region118: #{tpu_custom_call.1} parent=103 // pred_region
                loop: start=0, step=1, limit=1
                $region120: #{tpu_custom_call.1} parent=118 // loop_pre_header
                  _
                $region121: #{tpu_custom_call.1} parent=118 // loop_header
                  %s2773 = sphi 0, %s2777
                  %p2774 = scmp.ge.s32.totalorder %s2773, 1
                  %s2778 = sphi %s2724, %s2724
                  %s2779 = sphi %s2746, %s2746
                $region122: #{tpu_custom_call.1} parent=118 // loop_header_branch
                  %2776 = sbr.rel (%p2774) target = $region126
                $region123: #{tpu_custom_call.1} parent=118 // loop_body
                  _
                $region124: #{tpu_custom_call.1} parent=118 // loop_footer
                  %s2777 = sadd.s32 1, %s2773
                $region125: #{tpu_custom_call.1} parent=118 // loop_footer_branch
                  %2772 = sbr.rel target = $region121
                $region126: #{tpu_custom_call.1} parent=118 // loop_exit
                  _
                loop: start=0, step=1, limit=1
                $region127: #{tpu_custom_call.1} parent=118 // loop_pre_header
                  _
                $region128: #{tpu_custom_call.1} parent=118 // loop_header
                  %s2782 = sphi 0, %s2786
                  %p2783 = scmp.ge.s32.totalorder %s2782, 1
                  %s2787 = sphi %s2724, %s2724
                  %s2788 = sphi %s2746, %s2746
                $region129: #{tpu_custom_call.1} parent=118 // loop_header_branch
                  %2785 = sbr.rel (%p2783) target = $region133
                $region130: #{tpu_custom_call.1} parent=118 // loop_body
                  %v2789 = vld [vmem:[%s2787] sm:$0xf]
                  %2790 = vst [vmem:[%s2788] sm:$0xf] %v2789
                  %v2791 = vld [vmem:[%s2787 + $0x4] sm:$0xf]
                  %2792 = vst [vmem:[%s2788 + $0x8] sm:$0xf] %v2791
                  %v2793 = vld [vmem:[%s2787 + $0x8] sm:$0xf]
                  %2794 = vst [vmem:[%s2788 + $0x10] sm:$0xf] %v2793
                  %v2795 = vld [vmem:[%s2787 + $0xc] sm:$0xf]
                  %2796 = vst [vmem:[%s2788 + $0x18] sm:$0xf] %v2795
                $region131: #{tpu_custom_call.1} parent=118 // loop_footer
                  %s2786 = sadd.s32 1, %s2782
                $region132: #{tpu_custom_call.1} parent=118 // loop_footer_branch
                  %2781 = sbr.rel target = $region128
                $region133: #{tpu_custom_call.1} parent=118 // loop_exit
                  _
              $region119: #{tpu_custom_call.1} parent=103 // pred_fallthru
                _
            $region104: #{tpu_custom_call.1} parent=99 // pred_fallthru
              _
            // Predicated region
            $region105: #{tpu_custom_call.1} parent=99 // pred_check
              _
            $region106: #{tpu_custom_call.1} parent=99 // pred_check_branch
              %2752 = sbr.rel (0) target = $region108
            $region107: #{tpu_custom_call.1} parent=99 // pred_region
              loop: start=0, step=1, limit=1
              $region109: #{tpu_custom_call.1} parent=107 // loop_pre_header
                _
              $region110: #{tpu_custom_call.1} parent=107 // loop_header
                %s2755 = sphi 0, %s2759
                %p2756 = scmp.ge.s32.totalorder %s2755, 1
                %s2760 = sphi %s2724, %s2724
                %s2761 = sphi %s2746, %s2746
              $region111: #{tpu_custom_call.1} parent=107 // loop_header_branch
                %2758 = sbr.rel (%p2756) target = $region115
              $region112: #{tpu_custom_call.1} parent=107 // loop_body
                %v2762 = vld [vmem:[%s2760] sm:$0xf]
                %2763 = vst [vmem:[%s2761] sm:$0xf] %v2762
                %v2764 = vld [vmem:[%s2760 + $0x4] sm:$0xf]
                %2765 = vst [vmem:[%s2761 + $0x8] sm:$0xf] %v2764
                %v2766 = vld [vmem:[%s2760 + $0x8] sm:$0xf]
                %2767 = vst [vmem:[%s2761 + $0x10] sm:$0xf] %v2766
                %v2768 = vld [vmem:[%s2760 + $0xc] sm:$0xf]
                %2769 = vst [vmem:[%s2761 + $0x18] sm:$0xf] %v2768
              $region113: #{tpu_custom_call.1} parent=107 // loop_footer
                %s2759 = sadd.s32 1, %s2755
              $region114: #{tpu_custom_call.1} parent=107 // loop_footer_branch
                %2754 = sbr.rel target = $region110
              $region115: #{tpu_custom_call.1} parent=107 // loop_exit
                _
            $region108: #{tpu_custom_call.1} parent=99 // pred_fallthru
              _
          $region100: #{tpu_custom_call.1} parent=95 // pred_fallthru
            _
          %2797 = vnop
        $region96: #{tpu_custom_call.1} parent=63 // pred_fallthru
          _
      $region64: #{tpu_custom_call.1} parent=5 // pred_fallthru
        _
      %p2798 = scmp.le.s32.totalorder 2, %s30
      // Predicated region
      $region134: #{tpu_custom_call.1} parent=5 // pred_check
        %p2799 = pneg %p2798
      $region135: #{tpu_custom_call.1} parent=5 // pred_check_branch
        %2801 = sbr.rel (%p2799) target = $region137
      $region136: #{tpu_custom_call.1} parent=5 // pred_region
        %s2802 = ssub.s32 %s30, 2
        // Predicated region
        $region138: #{tpu_custom_call.1} parent=136 // pred_check
          %p2803 = pneg %p321
        $region139: #{tpu_custom_call.1} parent=136 // pred_check_branch
          %2805 = sbr.rel (%p2803) target = $region141
        $region140: #{tpu_custom_call.1} parent=136 // pred_region
          %s2806 = sand.u32 %s306, 1
          %s2807 = scalar_lea.sflag [#allocation4], %s2806
          %s2808 = sand.u32 %s306, 1
          %s2809 = smul.addr %s2808, 8
          %s2810 = scalar_lea.vmem [#allocation13], %s2809
          %2811 = dma.done %s2807, 128
        $region141: #{tpu_custom_call.1} parent=136 // pred_fallthru
          _
        // Predicated region
        $region142: #{tpu_custom_call.1} parent=136 // pred_check
          %p2812 = pneg %p349
        $region143: #{tpu_custom_call.1} parent=136 // pred_check_branch
          %2814 = sbr.rel (%p2812) target = $region145
        $region144: #{tpu_custom_call.1} parent=136 // pred_region
          %s2815 = sand.u32 %s334, 1
          %s2816 = sand.u32 %s334, 1
          %s2817 = smul.addr %s2816, 16
          %s2818 = scalar_lea.vmem [#allocation14], %s2817
        $region145: #{tpu_custom_call.1} parent=136 // pred_fallthru
          _
      $region137: #{tpu_custom_call.1} parent=5 // pred_fallthru
        _
    $region6: #{tpu_custom_call.1} parent=1 // loop_footer
      %s34 = sadd.s32 1, %s30
    $region7: #{tpu_custom_call.1} parent=1 // loop_footer_branch
      %29 = sbr.rel target = $region3
    $region8: #{tpu_custom_call.1} parent=1 // loop_exit
      _
    %2819 = vsyncpa [#allocation3], 1
    %s2820 = scalar_lea.sflag [#allocation3], 1
    %2821 = vsyncpa %s2820, 1
    %2822 = vsyncpa [#allocation6], 1
    %s2823 = scalar_lea.sflag [#allocation6], 1
    %2824 = vsyncpa %s2823, 1
    %2825 = vsyncpa [#allocation9], 1
    %2826 = vsyncpa [#allocation12], 1
    %2827 = vsyncpa [#allocation4], 1
    %s2828 = scalar_lea.sflag [#allocation4], 1
    %2829 = vsyncpa %s2828, 1

</llo_original>
